<compile_context>
chip_gen: v6e
topology: v6e:2x2x1
jax: 0.10.0
libtpu: 0.0.40
codegen_flags: <defaults>
</compile_context>

<pallas_src>
import jax
import jax.numpy as jnp
from jax.experimental import pallas as pl
from jax.experimental.pallas import tpu as pltpu


# ----------------------------------------------------------------------------
# Fused Pallas kernel: entire SimpleNN forward in one invocation.
# ----------------------------------------------------------------------------
def _simplenn_fused_kernel(mask_ref, omm_ref, w1_ref, b1_ref, w2_ref, b2_ref,
                           w3_ref, b3_ref, z_ref, x_ref, ld_ref):
    z = z_ref[...]                                  # [B, n] f32
    B, n = z.shape
    L = w1_ref.shape[0]

    # Elementwise logdet accumulator; reduced + stored once at the end.
    s_acc = jnp.zeros((B, n), jnp.float32)

    # Static unroll over layers (L is small); weights live in VMEM whole.
    for l in range(L):
        m = mask_ref[l]                             # [1, n]
        omm = omm_ref[l]                            # [1, n] == 1 - mask
        # Fused scale||translation MLP (mask already folded into W1).
        h = jnp.dot(z, w1_ref[l],
                    preferred_element_type=jnp.float32) + b1_ref[l]   # [B, 2W]
        h = jnp.tanh(h)
        h = jnp.dot(h, w2_ref[l],
                    preferred_element_type=jnp.float32) + b2_ref[l]   # [B, 2W]
        h = jnp.tanh(h)
        st = jnp.dot(h, w3_ref[l],
                     preferred_element_type=jnp.float32) + b3_ref[l]  # [B, 2n]
        s = st[:, :n]                               # scale output
        t = st[:, n:]                               # translation output

        # Affine coupling update (VPU/EUP, f32).
        z = m * z + omm * (z * jnp.exp(s) + t)
        s_acc = s_acc + omm * s

    # Single HBM writeback.
    x_ref[...] = z
    ld_ref[...] = jnp.sum(s_acc, axis=1, keepdims=True)


# ----------------------------------------------------------------------------
# Wrapper: one fused pallas_call, no layer grid.
# ----------------------------------------------------------------------------
def simple_nn_forward(z, stacked):
    """SimpleNN.forward(z) -> (x [B, n], log_det [B]) via one fused kernel."""
    B, n = z.shape
    L = stacked["w1"].shape[0]
    W2 = stacked["w1"].shape[-1]        # = 2 * width
    N2 = stacked["w3"].shape[-1]        # = 2 * n

    grid_spec = pltpu.PrefetchScalarGridSpec(
        num_scalar_prefetch=0,
        grid=(1,),                                              # single step
        in_specs=[
            pl.BlockSpec((L, 1, n),   lambda i: (0, 0, 0)),     # mask
            pl.BlockSpec((L, 1, n),   lambda i: (0, 0, 0)),     # 1 - mask
            pl.BlockSpec((L, n, W2),  lambda i: (0, 0, 0)),     # W1
            pl.BlockSpec((L, 1, W2),  lambda i: (0, 0, 0)),     # b1
            pl.BlockSpec((L, W2, W2), lambda i: (0, 0, 0)),     # W2
            pl.BlockSpec((L, 1, W2),  lambda i: (0, 0, 0)),     # b2
            pl.BlockSpec((L, W2, N2), lambda i: (0, 0, 0)),     # W3
            pl.BlockSpec((L, 1, N2),  lambda i: (0, 0, 0)),     # b3
            pl.BlockSpec((B, n),      lambda i: (0, 0)),        # z
        ],
        out_specs=(
            pl.BlockSpec((B, n), lambda i: (0, 0)),             # x
            pl.BlockSpec((B, 1), lambda i: (0, 0)),             # logdet
        ),
    )

    flops = int(L * 2 * B * (n * W2 + W2 * W2 + W2 * N2))
    transcendentals = int(L * B * (2 * W2 + n))                 # 2x tanh + exp
    bytes_accessed = int(
        L * (n * W2 + W2 * W2 + W2 * N2 + 2 * W2 + N2 + 2 * n) * 4
        + (2 * B * n + B) * 4)

    x, ld = pl.pallas_call(
        _simplenn_fused_kernel,
        out_shape=(jax.ShapeDtypeStruct((B, n), jnp.float32),
                   jax.ShapeDtypeStruct((B, 1), jnp.float32)),
        grid_spec=grid_spec,
        compiler_params=pltpu.CompilerParams(
            dimension_semantics=("arbitrary",)),
        cost_estimate=pl.CostEstimate(flops=flops,
                                      transcendentals=transcendentals,
                                      bytes_accessed=bytes_accessed),
    )(stacked["mask"], stacked["one_minus_mask"],
      stacked["w1"], stacked["b1"],
      stacked["w2"], stacked["b2"],
      stacked["w3"], stacked["b3"], z)
    return x, ld[:, 0]


# ----------------------------------------------------------------------------
# Parameter setup (plain JAX glue).  Mimics nn.Linear init deterministically,
# stores weights pre-transposed to [in, out].
# ----------------------------------------------------------------------------
def _init_linear(key, fan_in, fan_out):
    kw, kb = jax.random.split(key)
    bound = 1.0 / jnp.sqrt(fan_in)
    w = jax.random.uniform(kw, (fan_in, fan_out), jnp.float32, -bound, bound)
    b = jax.random.uniform(kb, (1, fan_out), jnp.float32, -bound, bound)
    return w, b


def init_coupling_params(key, n, width):
    keys = jax.random.split(key, 6)
    p = {}
    p["sw1"], p["sb1"] = _init_linear(keys[0], n, width)
    p["sw2"], p["sb2"] = _init_linear(keys[1], width, width)
    p["sw3"], p["sb3"] = _init_linear(keys[2], width, n)
    p["tw1"], p["tb1"] = _init_linear(keys[3], n, width)
    p["tw2"], p["tb2"] = _init_linear(keys[4], width, width)
    p["tw3"], p["tb3"] = _init_linear(keys[5], width, n)
    return p


def pack_layers(raw_params, masks):
    """Fold masks into W1, concat scale/trans MLPs, stack across layers (f32)."""
    W1s, B1s, W2s, B2s, W3s, B3s, Ms, OMMs = [], [], [], [], [], [], [], []
    for p, m in zip(raw_params, masks):
        n, width = p["sw1"].shape
        m_col = m.reshape(n, 1)
        # mask is binary, so (z*m) @ W1 == z @ (m_col * W1)  (exact).
        w1 = jnp.concatenate([p["sw1"] * m_col, p["tw1"] * m_col], axis=1)
        b1 = jnp.concatenate([p["sb1"], p["tb1"]], axis=1)
        w2 = jnp.zeros((2 * width, 2 * width), jnp.float32)
        w2 = w2.at[:width, :width].set(p["sw2"]).at[width:, width:].set(p["tw2"])
        b2 = jnp.concatenate([p["sb2"], p["tb2"]], axis=1)
        w3 = jnp.zeros((2 * width, 2 * n), jnp.float32)
        w3 = w3.at[:width, :n].set(p["sw3"]).at[width:, n:].set(p["tw3"])
        b3 = jnp.concatenate([p["sb3"], p["tb3"]], axis=1)
        W1s.append(w1); B1s.append(b1)
        W2s.append(w2); B2s.append(b2)
        W3s.append(w3); B3s.append(b3)
        Ms.append(m.reshape(1, n))
        OMMs.append((1.0 - m).reshape(1, n))
    return dict(mask=jnp.stack(Ms), one_minus_mask=jnp.stack(OMMs),
                w1=jnp.stack(W1s), b1=jnp.stack(B1s),
                w2=jnp.stack(W2s), b2=jnp.stack(B2s),
                w3=jnp.stack(W3s), b3=jnp.stack(B3s))


# ----------------------------------------------------------------------------
# Pure-JAX reference (original per-MLP f32 formulation, matches the PyTorch
# module semantics).
# ----------------------------------------------------------------------------
def _ref_forward(z, raw_params, masks):
    def dot(a, w):
        return jnp.dot(a, w, preferred_element_type=jnp.float32)

    log_det = jnp.zeros((z.shape[0],), jnp.float32)
    for p, m in zip(raw_params, masks):
        m = m.reshape(1, -1)
        zm = z * m
        s = jnp.tanh(dot(zm, p["sw1"]) + p["sb1"])
        s = jnp.tanh(dot(s, p["sw2"]) + p["sb2"])
        s = dot(s, p["sw3"]) + p["sb3"]
        t = jnp.tanh(dot(zm, p["tw1"]) + p["tb1"])
        t = jnp.tanh(dot(t, p["tw2"]) + p["tb2"])
        t = dot(t, p["tw3"]) + p["tb3"]
        z = m * z + (1.0 - m) * (z * jnp.exp(s) + t)
        log_det = log_det + jnp.sum((1.0 - m) * s, axis=1)
    return z, log_det


if __name__ == "__main__":
    # Small, module-consistent shapes.
    B = 8                    # batch
    n = 8                    # datum size (len(mask))
    width = 32               # hidden width of scale/translation MLPs
    num_affine_layers = 2    # -> 4 coupling layers (mask1, mask2 alternating)

    key = jax.random.PRNGKey(0)

    mask1 = jnp.array([1.0, 0.0] * (n // 2), jnp.float32)
    mask2 = 1.0 - mask1

    raw_params, masks = [], []
    for _ in range(num_affine_layers):
        key, k1, k2 = jax.random.split(key, 3)
        raw_params.append(init_coupling_params(k1, n, width)); masks.append(mask1)
        raw_params.append(init_coupling_params(k2, n, width)); masks.append(mask2)

    stacked = pack_layers(raw_params, masks)

    key, kz = jax.random.split(key)
    z = jax.random.normal(kz, (B, n), jnp.float32)

    x, log_det = simple_nn_forward(z, stacked)
    x = jax.block_until_ready(x)
    log_det = jax.block_until_ready(log_det)

    x_ref, ld_ref = _ref_forward(z, raw_params, masks)
    assert jnp.allclose(x, x_ref, atol=5e-3, rtol=5e-3), (x, x_ref)
    assert jnp.allclose(log_det, ld_ref, atol=5e-3, rtol=5e-3), (log_det, ld_ref)

    print("KERNEL_OK")
</pallas_src>

<mosaic_0001>
module attributes {stable_mosaic.version = 11 : i64} {
  func.func @_simplenn_fused_kernel(%arg0: i32, %arg1: memref<4x1x8xf32, #tpu.memory_space<vmem>>, %arg2: memref<4x1x8xf32, #tpu.memory_space<vmem>>, %arg3: memref<4x8x64xf32, #tpu.memory_space<vmem>>, %arg4: memref<4x1x64xf32, #tpu.memory_space<vmem>>, %arg5: memref<4x64x64xf32, #tpu.memory_space<vmem>>, %arg6: memref<4x1x64xf32, #tpu.memory_space<vmem>>, %arg7: memref<4x64x16xf32, #tpu.memory_space<vmem>>, %arg8: memref<4x1x16xf32, #tpu.memory_space<vmem>>, %arg9: memref<8x8xf32, #tpu.memory_space<vmem>>, %arg10: memref<8x8xf32, #tpu.memory_space<vmem>>, %arg11: memref<8x1xf32, #tpu.memory_space<vmem>>) attributes {dimension_semantics = [#tpu.dimension_semantics<arbitrary>], iteration_bounds = array<i64: 1>, scalar_prefetch = 0 : i64, scratch_operands = 0 : i64, tpu.core_type = #tpu.core_type<tc>, window_params = [{pipeline_mode = #tpu.pipeline_mode<synchronous>, transform_indices = @transform_0, window_bounds = array<i64: 4, 1, 8>}, {pipeline_mode = #tpu.pipeline_mode<synchronous>, transform_indices = @transform_1, window_bounds = array<i64: 4, 1, 8>}, {pipeline_mode = #tpu.pipeline_mode<synchronous>, transform_indices = @transform_2, window_bounds = array<i64: 4, 8, 64>}, {pipeline_mode = #tpu.pipeline_mode<synchronous>, transform_indices = @transform_3, window_bounds = array<i64: 4, 1, 64>}, {pipeline_mode = #tpu.pipeline_mode<synchronous>, transform_indices = @transform_4, window_bounds = array<i64: 4, 64, 64>}, {pipeline_mode = #tpu.pipeline_mode<synchronous>, transform_indices = @transform_5, window_bounds = array<i64: 4, 1, 64>}, {pipeline_mode = #tpu.pipeline_mode<synchronous>, transform_indices = @transform_6, window_bounds = array<i64: 4, 64, 16>}, {pipeline_mode = #tpu.pipeline_mode<synchronous>, transform_indices = @transform_7, window_bounds = array<i64: 4, 1, 16>}, {pipeline_mode = #tpu.pipeline_mode<synchronous>, transform_indices = @transform_8, window_bounds = array<i64: 8, 8>}, {pipeline_mode = #tpu.pipeline_mode<synchronous>, transform_indices = @transform_9, window_bounds = array<i64: 8, 8>}, {pipeline_mode = #tpu.pipeline_mode<synchronous>, transform_indices = @transform_10, window_bounds = array<i64: 8, 1>}]} {
    %c0 = arith.constant 0 : index
    %c0_0 = arith.constant 0 : index
    %0 = vector.load %arg9[%c0, %c0_0] : memref<8x8xf32, #tpu.memory_space<vmem>>, vector<8x8xf32>
    %cst = arith.constant 0.000000e+00 : f32
    %1 = vector.broadcast %cst : f32 to vector<8x8xf32>
    %c0_1 = arith.constant 0 : index
    %c0_2 = arith.constant 0 : index
    %c0_3 = arith.constant 0 : index
    %2 = vector.load %arg1[%c0_1, %c0_2, %c0_3] : memref<4x1x8xf32, #tpu.memory_space<vmem>>, vector<1x1x8xf32>
    %3 = vector.shape_cast %2 : vector<1x1x8xf32> to vector<1x8xf32>
    %c0_4 = arith.constant 0 : index
    %c0_5 = arith.constant 0 : index
    %c0_6 = arith.constant 0 : index
    %4 = vector.load %arg2[%c0_4, %c0_5, %c0_6] : memref<4x1x8xf32, #tpu.memory_space<vmem>>, vector<1x1x8xf32>
    %5 = vector.shape_cast %4 : vector<1x1x8xf32> to vector<1x8xf32>
    %c0_7 = arith.constant 0 : index
    %c0_8 = arith.constant 0 : index
    %c0_9 = arith.constant 0 : index
    %6 = vector.load %arg3[%c0_7, %c0_8, %c0_9] : memref<4x8x64xf32, #tpu.memory_space<vmem>>, vector<1x8x64xf32>
    %7 = vector.shape_cast %6 : vector<1x8x64xf32> to vector<8x64xf32>
    %cst_10 = arith.constant dense<0.000000e+00> : vector<8x64xf32>
    %8 = tpu.matmul %0, %7, %cst_10 {dimension_numbers = #tpu.dot_dimension_numbers<[1], [0], [0], [1], [0, 0, 1, 1], [], []>} : vector<8x8xf32>, vector<8x64xf32>, vector<8x64xf32> -> vector<8x64xf32>
    %c0_11 = arith.constant 0 : index
    %c0_12 = arith.constant 0 : index
    %c0_13 = arith.constant 0 : index
    %9 = vector.load %arg4[%c0_11, %c0_12, %c0_13] : memref<4x1x64xf32, #tpu.memory_space<vmem>>, vector<1x1x64xf32>
    %10 = vector.shape_cast %9 : vector<1x1x64xf32> to vector<1x64xf32>
    %11 = vector.broadcast %10 : vector<1x64xf32> to vector<8x64xf32>
    %12 = arith.addf %8, %11 : vector<8x64xf32>
    %13 = math.tanh %12 : vector<8x64xf32>
    %c0_14 = arith.constant 0 : index
    %c0_15 = arith.constant 0 : index
    %c0_16 = arith.constant 0 : index
    %14 = vector.load %arg5[%c0_14, %c0_15, %c0_16] : memref<4x64x64xf32, #tpu.memory_space<vmem>>, vector<1x64x64xf32>
    %15 = vector.shape_cast %14 : vector<1x64x64xf32> to vector<64x64xf32>
    %cst_17 = arith.constant dense<0.000000e+00> : vector<8x64xf32>
    %16 = tpu.matmul %13, %15, %cst_17 {dimension_numbers = #tpu.dot_dimension_numbers<[1], [0], [0], [1], [0, 0, 1, 1], [], []>} : vector<8x64xf32>, vector<64x64xf32>, vector<8x64xf32> -> vector<8x64xf32>
    %c0_18 = arith.constant 0 : index
    %c0_19 = arith.constant 0 : index
    %c0_20 = arith.constant 0 : index
    %17 = vector.load %arg6[%c0_18, %c0_19, %c0_20] : memref<4x1x64xf32, #tpu.memory_space<vmem>>, vector<1x1x64xf32>
    %18 = vector.shape_cast %17 : vector<1x1x64xf32> to vector<1x64xf32>
    %19 = vector.broadcast %18 : vector<1x64xf32> to vector<8x64xf32>
    %20 = arith.addf %16, %19 : vector<8x64xf32>
    %21 = math.tanh %20 : vector<8x64xf32>
    %c0_21 = arith.constant 0 : index
    %c0_22 = arith.constant 0 : index
    %c0_23 = arith.constant 0 : index
    %22 = vector.load %arg7[%c0_21, %c0_22, %c0_23] : memref<4x64x16xf32, #tpu.memory_space<vmem>>, vector<1x64x16xf32>
    %23 = vector.shape_cast %22 : vector<1x64x16xf32> to vector<64x16xf32>
    %cst_24 = arith.constant dense<0.000000e+00> : vector<8x16xf32>
    %24 = tpu.matmul %21, %23, %cst_24 {dimension_numbers = #tpu.dot_dimension_numbers<[1], [0], [0], [1], [0, 0, 1, 1], [], []>} : vector<8x64xf32>, vector<64x16xf32>, vector<8x16xf32> -> vector<8x16xf32>
    %c0_25 = arith.constant 0 : index
    %c0_26 = arith.constant 0 : index
    %c0_27 = arith.constant 0 : index
    %25 = vector.load %arg8[%c0_25, %c0_26, %c0_27] : memref<4x1x16xf32, #tpu.memory_space<vmem>>, vector<1x1x16xf32>
    %26 = vector.shape_cast %25 : vector<1x1x16xf32> to vector<1x16xf32>
    %27 = vector.broadcast %26 : vector<1x16xf32> to vector<8x16xf32>
    %28 = arith.addf %24, %27 : vector<8x16xf32>
    %29 = vector.extract_strided_slice %28 {offsets = [0, 0], sizes = [8, 8], strides = [1, 1]} : vector<8x16xf32> to vector<8x8xf32>
    %30 = vector.extract_strided_slice %28 {offsets = [0, 8], sizes = [8, 8], strides = [1, 1]} : vector<8x16xf32> to vector<8x8xf32>
    %31 = vector.broadcast %3 : vector<1x8xf32> to vector<8x8xf32>
    %32 = arith.mulf %31, %0 : vector<8x8xf32>
    %33 = math.exp %29 : vector<8x8xf32>
    %34 = arith.mulf %0, %33 : vector<8x8xf32>
    %35 = arith.addf %34, %30 : vector<8x8xf32>
    %36 = vector.broadcast %5 : vector<1x8xf32> to vector<8x8xf32>
    %37 = arith.mulf %36, %35 : vector<8x8xf32>
    %38 = arith.addf %32, %37 : vector<8x8xf32>
    %39 = vector.broadcast %5 : vector<1x8xf32> to vector<8x8xf32>
    %40 = arith.mulf %39, %29 : vector<8x8xf32>
    %41 = arith.addf %1, %40 : vector<8x8xf32>
    %c1 = arith.constant 1 : index
    %c0_28 = arith.constant 0 : index
    %c0_29 = arith.constant 0 : index
    %42 = vector.load %arg1[%c1, %c0_28, %c0_29] : memref<4x1x8xf32, #tpu.memory_space<vmem>>, vector<1x1x8xf32>
    %43 = vector.shape_cast %42 : vector<1x1x8xf32> to vector<1x8xf32>
    %c1_30 = arith.constant 1 : index
    %c0_31 = arith.constant 0 : index
    %c0_32 = arith.constant 0 : index
    %44 = vector.load %arg2[%c1_30, %c0_31, %c0_32] : memref<4x1x8xf32, #tpu.memory_space<vmem>>, vector<1x1x8xf32>
    %45 = vector.shape_cast %44 : vector<1x1x8xf32> to vector<1x8xf32>
    %c1_33 = arith.constant 1 : index
    %c0_34 = arith.constant 0 : index
    %c0_35 = arith.constant 0 : index
    %46 = vector.load %arg3[%c1_33, %c0_34, %c0_35] : memref<4x8x64xf32, #tpu.memory_space<vmem>>, vector<1x8x64xf32>
    %47 = vector.shape_cast %46 : vector<1x8x64xf32> to vector<8x64xf32>
    %cst_36 = arith.constant dense<0.000000e+00> : vector<8x64xf32>
    %48 = tpu.matmul %38, %47, %cst_36 {dimension_numbers = #tpu.dot_dimension_numbers<[1], [0], [0], [1], [0, 0, 1, 1], [], []>} : vector<8x8xf32>, vector<8x64xf32>, vector<8x64xf32> -> vector<8x64xf32>
    %c1_37 = arith.constant 1 : index
    %c0_38 = arith.constant 0 : index
    %c0_39 = arith.constant 0 : index
    %49 = vector.load %arg4[%c1_37, %c0_38, %c0_39] : memref<4x1x64xf32, #tpu.memory_space<vmem>>, vector<1x1x64xf32>
    %50 = vector.shape_cast %49 : vector<1x1x64xf32> to vector<1x64xf32>
    %51 = vector.broadcast %50 : vector<1x64xf32> to vector<8x64xf32>
    %52 = arith.addf %48, %51 : vector<8x64xf32>
    %53 = math.tanh %52 : vector<8x64xf32>
    %c1_40 = arith.constant 1 : index
    %c0_41 = arith.constant 0 : index
    %c0_42 = arith.constant 0 : index
    %54 = vector.load %arg5[%c1_40, %c0_41, %c0_42] : memref<4x64x64xf32, #tpu.memory_space<vmem>>, vector<1x64x64xf32>
    %55 = vector.shape_cast %54 : vector<1x64x64xf32> to vector<64x64xf32>
    %cst_43 = arith.constant dense<0.000000e+00> : vector<8x64xf32>
    %56 = tpu.matmul %53, %55, %cst_43 {dimension_numbers = #tpu.dot_dimension_numbers<[1], [0], [0], [1], [0, 0, 1, 1], [], []>} : vector<8x64xf32>, vector<64x64xf32>, vector<8x64xf32> -> vector<8x64xf32>
    %c1_44 = arith.constant 1 : index
    %c0_45 = arith.constant 0 : index
    %c0_46 = arith.constant 0 : index
    %57 = vector.load %arg6[%c1_44, %c0_45, %c0_46] : memref<4x1x64xf32, #tpu.memory_space<vmem>>, vector<1x1x64xf32>
    %58 = vector.shape_cast %57 : vector<1x1x64xf32> to vector<1x64xf32>
    %59 = vector.broadcast %58 : vector<1x64xf32> to vector<8x64xf32>
    %60 = arith.addf %56, %59 : vector<8x64xf32>
    %61 = math.tanh %60 : vector<8x64xf32>
    %c1_47 = arith.constant 1 : index
    %c0_48 = arith.constant 0 : index
    %c0_49 = arith.constant 0 : index
    %62 = vector.load %arg7[%c1_47, %c0_48, %c0_49] : memref<4x64x16xf32, #tpu.memory_space<vmem>>, vector<1x64x16xf32>
    %63 = vector.shape_cast %62 : vector<1x64x16xf32> to vector<64x16xf32>
    %cst_50 = arith.constant dense<0.000000e+00> : vector<8x16xf32>
    %64 = tpu.matmul %61, %63, %cst_50 {dimension_numbers = #tpu.dot_dimension_numbers<[1], [0], [0], [1], [0, 0, 1, 1], [], []>} : vector<8x64xf32>, vector<64x16xf32>, vector<8x16xf32> -> vector<8x16xf32>
    %c1_51 = arith.constant 1 : index
    %c0_52 = arith.constant 0 : index
    %c0_53 = arith.constant 0 : index
    %65 = vector.load %arg8[%c1_51, %c0_52, %c0_53] : memref<4x1x16xf32, #tpu.memory_space<vmem>>, vector<1x1x16xf32>
    %66 = vector.shape_cast %65 : vector<1x1x16xf32> to vector<1x16xf32>
    %67 = vector.broadcast %66 : vector<1x16xf32> to vector<8x16xf32>
    %68 = arith.addf %64, %67 : vector<8x16xf32>
    %69 = vector.extract_strided_slice %68 {offsets = [0, 0], sizes = [8, 8], strides = [1, 1]} : vector<8x16xf32> to vector<8x8xf32>
    %70 = vector.extract_strided_slice %68 {offsets = [0, 8], sizes = [8, 8], strides = [1, 1]} : vector<8x16xf32> to vector<8x8xf32>
    %71 = vector.broadcast %43 : vector<1x8xf32> to vector<8x8xf32>
    %72 = arith.mulf %71, %38 : vector<8x8xf32>
    %73 = math.exp %69 : vector<8x8xf32>
    %74 = arith.mulf %38, %73 : vector<8x8xf32>
    %75 = arith.addf %74, %70 : vector<8x8xf32>
    %76 = vector.broadcast %45 : vector<1x8xf32> to vector<8x8xf32>
    %77 = arith.mulf %76, %75 : vector<8x8xf32>
    %78 = arith.addf %72, %77 : vector<8x8xf32>
    %79 = vector.broadcast %45 : vector<1x8xf32> to vector<8x8xf32>
    %80 = arith.mulf %79, %69 : vector<8x8xf32>
    %81 = arith.addf %41, %80 : vector<8x8xf32>
    %c2 = arith.constant 2 : index
    %c0_54 = arith.constant 0 : index
    %c0_55 = arith.constant 0 : index
    %82 = vector.load %arg1[%c2, %c0_54, %c0_55] : memref<4x1x8xf32, #tpu.memory_space<vmem>>, vector<1x1x8xf32>
    %83 = vector.shape_cast %82 : vector<1x1x8xf32> to vector<1x8xf32>
    %c2_56 = arith.constant 2 : index
    %c0_57 = arith.constant 0 : index
    %c0_58 = arith.constant 0 : index
    %84 = vector.load %arg2[%c2_56, %c0_57, %c0_58] : memref<4x1x8xf32, #tpu.memory_space<vmem>>, vector<1x1x8xf32>
    %85 = vector.shape_cast %84 : vector<1x1x8xf32> to vector<1x8xf32>
    %c2_59 = arith.constant 2 : index
    %c0_60 = arith.constant 0 : index
    %c0_61 = arith.constant 0 : index
    %86 = vector.load %arg3[%c2_59, %c0_60, %c0_61] : memref<4x8x64xf32, #tpu.memory_space<vmem>>, vector<1x8x64xf32>
    %87 = vector.shape_cast %86 : vector<1x8x64xf32> to vector<8x64xf32>
    %cst_62 = arith.constant dense<0.000000e+00> : vector<8x64xf32>
    %88 = tpu.matmul %78, %87, %cst_62 {dimension_numbers = #tpu.dot_dimension_numbers<[1], [0], [0], [1], [0, 0, 1, 1], [], []>} : vector<8x8xf32>, vector<8x64xf32>, vector<8x64xf32> -> vector<8x64xf32>
    %c2_63 = arith.constant 2 : index
    %c0_64 = arith.constant 0 : index
    %c0_65 = arith.constant 0 : index
    %89 = vector.load %arg4[%c2_63, %c0_64, %c0_65] : memref<4x1x64xf32, #tpu.memory_space<vmem>>, vector<1x1x64xf32>
    %90 = vector.shape_cast %89 : vector<1x1x64xf32> to vector<1x64xf32>
    %91 = vector.broadcast %90 : vector<1x64xf32> to vector<8x64xf32>
    %92 = arith.addf %88, %91 : vector<8x64xf32>
    %93 = math.tanh %92 : vector<8x64xf32>
    %c2_66 = arith.constant 2 : index
    %c0_67 = arith.constant 0 : index
    %c0_68 = arith.constant 0 : index
    %94 = vector.load %arg5[%c2_66, %c0_67, %c0_68] : memref<4x64x64xf32, #tpu.memory_space<vmem>>, vector<1x64x64xf32>
    %95 = vector.shape_cast %94 : vector<1x64x64xf32> to vector<64x64xf32>
    %cst_69 = arith.constant dense<0.000000e+00> : vector<8x64xf32>
    %96 = tpu.matmul %93, %95, %cst_69 {dimension_numbers = #tpu.dot_dimension_numbers<[1], [0], [0], [1], [0, 0, 1, 1], [], []>} : vector<8x64xf32>, vector<64x64xf32>, vector<8x64xf32> -> vector<8x64xf32>
    %c2_70 = arith.constant 2 : index
    %c0_71 = arith.constant 0 : index
    %c0_72 = arith.constant 0 : index
    %97 = vector.load %arg6[%c2_70, %c0_71, %c0_72] : memref<4x1x64xf32, #tpu.memory_space<vmem>>, vector<1x1x64xf32>
    %98 = vector.shape_cast %97 : vector<1x1x64xf32> to vector<1x64xf32>
    %99 = vector.broadcast %98 : vector<1x64xf32> to vector<8x64xf32>
    %100 = arith.addf %96, %99 : vector<8x64xf32>
    %101 = math.tanh %100 : vector<8x64xf32>
    %c2_73 = arith.constant 2 : index
    %c0_74 = arith.constant 0 : index
    %c0_75 = arith.constant 0 : index
    %102 = vector.load %arg7[%c2_73, %c0_74, %c0_75] : memref<4x64x16xf32, #tpu.memory_space<vmem>>, vector<1x64x16xf32>
    %103 = vector.shape_cast %102 : vector<1x64x16xf32> to vector<64x16xf32>
    %cst_76 = arith.constant dense<0.000000e+00> : vector<8x16xf32>
    %104 = tpu.matmul %101, %103, %cst_76 {dimension_numbers = #tpu.dot_dimension_numbers<[1], [0], [0], [1], [0, 0, 1, 1], [], []>} : vector<8x64xf32>, vector<64x16xf32>, vector<8x16xf32> -> vector<8x16xf32>
    %c2_77 = arith.constant 2 : index
    %c0_78 = arith.constant 0 : index
    %c0_79 = arith.constant 0 : index
    %105 = vector.load %arg8[%c2_77, %c0_78, %c0_79] : memref<4x1x16xf32, #tpu.memory_space<vmem>>, vector<1x1x16xf32>
    %106 = vector.shape_cast %105 : vector<1x1x16xf32> to vector<1x16xf32>
    %107 = vector.broadcast %106 : vector<1x16xf32> to vector<8x16xf32>
    %108 = arith.addf %104, %107 : vector<8x16xf32>
    %109 = vector.extract_strided_slice %108 {offsets = [0, 0], sizes = [8, 8], strides = [1, 1]} : vector<8x16xf32> to vector<8x8xf32>
    %110 = vector.extract_strided_slice %108 {offsets = [0, 8], sizes = [8, 8], strides = [1, 1]} : vector<8x16xf32> to vector<8x8xf32>
    %111 = vector.broadcast %83 : vector<1x8xf32> to vector<8x8xf32>
    %112 = arith.mulf %111, %78 : vector<8x8xf32>
    %113 = math.exp %109 : vector<8x8xf32>
    %114 = arith.mulf %78, %113 : vector<8x8xf32>
    %115 = arith.addf %114, %110 : vector<8x8xf32>
    %116 = vector.broadcast %85 : vector<1x8xf32> to vector<8x8xf32>
    %117 = arith.mulf %116, %115 : vector<8x8xf32>
    %118 = arith.addf %112, %117 : vector<8x8xf32>
    %119 = vector.broadcast %85 : vector<1x8xf32> to vector<8x8xf32>
    %120 = arith.mulf %119, %109 : vector<8x8xf32>
    %121 = arith.addf %81, %120 : vector<8x8xf32>
    %c3 = arith.constant 3 : index
    %c0_80 = arith.constant 0 : index
    %c0_81 = arith.constant 0 : index
    %122 = vector.load %arg1[%c3, %c0_80, %c0_81] : memref<4x1x8xf32, #tpu.memory_space<vmem>>, vector<1x1x8xf32>
    %123 = vector.shape_cast %122 : vector<1x1x8xf32> to vector<1x8xf32>
    %c3_82 = arith.constant 3 : index
    %c0_83 = arith.constant 0 : index
    %c0_84 = arith.constant 0 : index
    %124 = vector.load %arg2[%c3_82, %c0_83, %c0_84] : memref<4x1x8xf32, #tpu.memory_space<vmem>>, vector<1x1x8xf32>
    %125 = vector.shape_cast %124 : vector<1x1x8xf32> to vector<1x8xf32>
    %c3_85 = arith.constant 3 : index
    %c0_86 = arith.constant 0 : index
    %c0_87 = arith.constant 0 : index
    %126 = vector.load %arg3[%c3_85, %c0_86, %c0_87] : memref<4x8x64xf32, #tpu.memory_space<vmem>>, vector<1x8x64xf32>
    %127 = vector.shape_cast %126 : vector<1x8x64xf32> to vector<8x64xf32>
    %cst_88 = arith.constant dense<0.000000e+00> : vector<8x64xf32>
    %128 = tpu.matmul %118, %127, %cst_88 {dimension_numbers = #tpu.dot_dimension_numbers<[1], [0], [0], [1], [0, 0, 1, 1], [], []>} : vector<8x8xf32>, vector<8x64xf32>, vector<8x64xf32> -> vector<8x64xf32>
    %c3_89 = arith.constant 3 : index
    %c0_90 = arith.constant 0 : index
    %c0_91 = arith.constant 0 : index
    %129 = vector.load %arg4[%c3_89, %c0_90, %c0_91] : memref<4x1x64xf32, #tpu.memory_space<vmem>>, vector<1x1x64xf32>
    %130 = vector.shape_cast %129 : vector<1x1x64xf32> to vector<1x64xf32>
    %131 = vector.broadcast %130 : vector<1x64xf32> to vector<8x64xf32>
    %132 = arith.addf %128, %131 : vector<8x64xf32>
    %133 = math.tanh %132 : vector<8x64xf32>
    %c3_92 = arith.constant 3 : index
    %c0_93 = arith.constant 0 : index
    %c0_94 = arith.constant 0 : index
    %134 = vector.load %arg5[%c3_92, %c0_93, %c0_94] : memref<4x64x64xf32, #tpu.memory_space<vmem>>, vector<1x64x64xf32>
    %135 = vector.shape_cast %134 : vector<1x64x64xf32> to vector<64x64xf32>
    %cst_95 = arith.constant dense<0.000000e+00> : vector<8x64xf32>
    %136 = tpu.matmul %133, %135, %cst_95 {dimension_numbers = #tpu.dot_dimension_numbers<[1], [0], [0], [1], [0, 0, 1, 1], [], []>} : vector<8x64xf32>, vector<64x64xf32>, vector<8x64xf32> -> vector<8x64xf32>
    %c3_96 = arith.constant 3 : index
    %c0_97 = arith.constant 0 : index
    %c0_98 = arith.constant 0 : index
    %137 = vector.load %arg6[%c3_96, %c0_97, %c0_98] : memref<4x1x64xf32, #tpu.memory_space<vmem>>, vector<1x1x64xf32>
    %138 = vector.shape_cast %137 : vector<1x1x64xf32> to vector<1x64xf32>
    %139 = vector.broadcast %138 : vector<1x64xf32> to vector<8x64xf32>
    %140 = arith.addf %136, %139 : vector<8x64xf32>
    %141 = math.tanh %140 : vector<8x64xf32>
    %c3_99 = arith.constant 3 : index
    %c0_100 = arith.constant 0 : index
    %c0_101 = arith.constant 0 : index
    %142 = vector.load %arg7[%c3_99, %c0_100, %c0_101] : memref<4x64x16xf32, #tpu.memory_space<vmem>>, vector<1x64x16xf32>
    %143 = vector.shape_cast %142 : vector<1x64x16xf32> to vector<64x16xf32>
    %cst_102 = arith.constant dense<0.000000e+00> : vector<8x16xf32>
    %144 = tpu.matmul %141, %143, %cst_102 {dimension_numbers = #tpu.dot_dimension_numbers<[1], [0], [0], [1], [0, 0, 1, 1], [], []>} : vector<8x64xf32>, vector<64x16xf32>, vector<8x16xf32> -> vector<8x16xf32>
    %c3_103 = arith.constant 3 : index
    %c0_104 = arith.constant 0 : index
    %c0_105 = arith.constant 0 : index
    %145 = vector.load %arg8[%c3_103, %c0_104, %c0_105] : memref<4x1x16xf32, #tpu.memory_space<vmem>>, vector<1x1x16xf32>
    %146 = vector.shape_cast %145 : vector<1x1x16xf32> to vector<1x16xf32>
    %147 = vector.broadcast %146 : vector<1x16xf32> to vector<8x16xf32>
    %148 = arith.addf %144, %147 : vector<8x16xf32>
    %149 = vector.extract_strided_slice %148 {offsets = [0, 0], sizes = [8, 8], strides = [1, 1]} : vector<8x16xf32> to vector<8x8xf32>
    %150 = vector.extract_strided_slice %148 {offsets = [0, 8], sizes = [8, 8], strides = [1, 1]} : vector<8x16xf32> to vector<8x8xf32>
    %151 = vector.broadcast %123 : vector<1x8xf32> to vector<8x8xf32>
    %152 = arith.mulf %151, %118 : vector<8x8xf32>
    %153 = math.exp %149 : vector<8x8xf32>
    %154 = arith.mulf %118, %153 : vector<8x8xf32>
    %155 = arith.addf %154, %150 : vector<8x8xf32>
    %156 = vector.broadcast %125 : vector<1x8xf32> to vector<8x8xf32>
    %157 = arith.mulf %156, %155 : vector<8x8xf32>
    %158 = arith.addf %152, %157 : vector<8x8xf32>
    %159 = vector.broadcast %125 : vector<1x8xf32> to vector<8x8xf32>
    %160 = arith.mulf %159, %149 : vector<8x8xf32>
    %161 = arith.addf %121, %160 : vector<8x8xf32>
    %c0_106 = arith.constant 0 : index
    %c0_107 = arith.constant 0 : index
    %162 = vector.load %arg10[%c0_106, %c0_107] : memref<8x8xf32, #tpu.memory_space<vmem>>, vector<8x8xf32>
    tpu.vector_store %arg10[%c0_106, %c0_107], %158 {strides = array<i32>} : memref<8x8xf32, #tpu.memory_space<vmem>>, vector<8x8xf32>,
    %cst_108 = arith.constant dense<0.000000e+00> : vector<8xf32>
    %163 = vector.multi_reduction <add>, %161, %cst_108 [1] : vector<8x8xf32> to vector<8xf32>
    %164 = vector.shape_cast %163 : vector<8xf32> to vector<8x1xf32>
    %c0_109 = arith.constant 0 : index
    %c0_110 = arith.constant 0 : index
    %165 = vector.load %arg11[%c0_109, %c0_110] : memref<8x1xf32, #tpu.memory_space<vmem>>, vector<8x1xf32>
    tpu.vector_store %arg11[%c0_109, %c0_110], %164 {strides = array<i32>} : memref<8x1xf32, #tpu.memory_space<vmem>>, vector<8x1xf32>,
    return
  }
  func.func @transform_0(%arg0: i32) -> (i32, i32, i32) {
    %c0_i32 = arith.constant 0 : i32
    %c0_i32_0 = arith.constant 0 : i32
    %c0_i32_1 = arith.constant 0 : i32
    %c0_i32_2 = arith.constant 0 : i32
    return %c0_i32, %c0_i32_0, %c0_i32_1 : i32, i32, i32
  }
  func.func @transform_1(%arg0: i32) -> (i32, i32, i32) {
    %c0_i32 = arith.constant 0 : i32
    %c0_i32_0 = arith.constant 0 : i32
    %c0_i32_1 = arith.constant 0 : i32
    %c0_i32_2 = arith.constant 0 : i32
    return %c0_i32, %c0_i32_0, %c0_i32_1 : i32, i32, i32
  }
  func.func @transform_2(%arg0: i32) -> (i32, i32, i32) {
    %c0_i32 = arith.constant 0 : i32
    %c0_i32_0 = arith.constant 0 : i32
    %c0_i32_1 = arith.constant 0 : i32
    %c0_i32_2 = arith.constant 0 : i32
    return %c0_i32, %c0_i32_0, %c0_i32_1 : i32, i32, i32
  }
  func.func @transform_3(%arg0: i32) -> (i32, i32, i32) {
    %c0_i32 = arith.constant 0 : i32
    %c0_i32_0 = arith.constant 0 : i32
    %c0_i32_1 = arith.constant 0 : i32
    %c0_i32_2 = arith.constant 0 : i32
    return %c0_i32, %c0_i32_0, %c0_i32_1 : i32, i32, i32
  }
  func.func @transform_4(%arg0: i32) -> (i32, i32, i32) {
    %c0_i32 = arith.constant 0 : i32
    %c0_i32_0 = arith.constant 0 : i32
    %c0_i32_1 = arith.constant 0 : i32
    %c0_i32_2 = arith.constant 0 : i32
    return %c0_i32, %c0_i32_0, %c0_i32_1 : i32, i32, i32
  }
  func.func @transform_5(%arg0: i32) -> (i32, i32, i32) {
    %c0_i32 = arith.constant 0 : i32
    %c0_i32_0 = arith.constant 0 : i32
    %c0_i32_1 = arith.constant 0 : i32
    %c0_i32_2 = arith.constant 0 : i32
    return %c0_i32, %c0_i32_0, %c0_i32_1 : i32, i32, i32
  }
  func.func @transform_6(%arg0: i32) -> (i32, i32, i32) {
    %c0_i32 = arith.constant 0 : i32
    %c0_i32_0 = arith.constant 0 : i32
    %c0_i32_1 = arith.constant 0 : i32
    %c0_i32_2 = arith.constant 0 : i32
    return %c0_i32, %c0_i32_0, %c0_i32_1 : i32, i32, i32
  }
  func.func @transform_7(%arg0: i32) -> (i32, i32, i32) {
    %c0_i32 = arith.constant 0 : i32
    %c0_i32_0 = arith.constant 0 : i32
    %c0_i32_1 = arith.constant 0 : i32
    %c0_i32_2 = arith.constant 0 : i32
    return %c0_i32, %c0_i32_0, %c0_i32_1 : i32, i32, i32
  }
  func.func @transform_8(%arg0: i32) -> (i32, i32) {
    %c0_i32 = arith.constant 0 : i32
    %c0_i32_0 = arith.constant 0 : i32
    %c0_i32_1 = arith.constant 0 : i32
    return %c0_i32, %c0_i32_0 : i32, i32
  }
  func.func @transform_9(%arg0: i32) -> (i32, i32) {
    %c0_i32 = arith.constant 0 : i32
    %c0_i32_0 = arith.constant 0 : i32
    %c0_i32_1 = arith.constant 0 : i32
    return %c0_i32, %c0_i32_0 : i32, i32
  }
  func.func @transform_10(%arg0: i32) -> (i32, i32) {
    %c0_i32 = arith.constant 0 : i32
    %c0_i32_0 = arith.constant 0 : i32
    %c0_i32_1 = arith.constant 0 : i32
    return %c0_i32, %c0_i32_0 : i32, i32
  }
}

</mosaic_0001>

<llo_original>
// kernel: tpu_custom_call.1
$region0: #{tpu_custom_call.1}
  #allocation0 [shape = 'u32[]', space=smem, size = 0x4, offset = 0x4, fixed_abs, tag = 'smem constant byte address 0x4 - core index']
  #allocation1 [shape = 'u32[144,128]{1,0:T(1,128)}', space=vmem, size = 0x12000, scoped, tag = 'internal scratch']
  %s0 = inlined_call_operand.vmem [shape: f32[4,1,8], index: 0, kind: input, shape index: {}]
  %s1 = inlined_call_operand.vmem [shape: f32[4,1,8], index: 1, kind: input, shape index: {}]
  %s2 = inlined_call_operand.vmem [shape: f32[4,8,64], index: 2, kind: input, shape index: {}]
  %s3 = inlined_call_operand.vmem [shape: f32[4,1,64], index: 3, kind: input, shape index: {}]
  %s4 = inlined_call_operand.vmem [shape: f32[4,64,64], index: 4, kind: input, shape index: {}]
  %s5 = inlined_call_operand.vmem [shape: f32[4,1,64], index: 5, kind: input, shape index: {}]
  %s6 = inlined_call_operand.vmem [shape: f32[4,64,16], index: 6, kind: input, shape index: {}]
  %s7 = inlined_call_operand.vmem [shape: f32[4,1,16], index: 7, kind: input, shape index: {}]
  %s8 = inlined_call_operand.vmem [shape: f32[8,8], index: 8, kind: input, shape index: {}]
  %s9 = inlined_call_operand.hbm [shape: f32[8,8], index: 9, kind: output, shape index: {0}]
  %s10 = inlined_call_operand.vmem [shape: f32[8,1], index: 10, kind: output, shape index: {1}]
  %11 = xla_tuple %s9, %s10
  %s12 = sld [smem:[#allocation0]]
  $region54: #{tpu_custom_call.1} parent=0
    _
  %s14 = ssub.s32 1, %s12
  %s15 = scalar_select 0, %s14, %s12
  $region1: #{tpu_custom_call.1} parent=0
    #allocation2 [shape = 'u8[4096]{0}', space=vmem, size = 0x1000, scoped, tag = 'output window, operand 0, single buffered']
    #allocation3 [shape = 's32[1]{0}', space=sflag, size = 0x4, scoped, tag = 'scoped memory for tpu_custom_call.1']
    %16 = vsyncpa [#allocation3], 0
    // Predicated region
    $region2: #{tpu_custom_call.1} parent=1 // pred_check
      _
    $region3: #{tpu_custom_call.1} parent=1 // pred_check_branch
      %18 = sbr.rel (0) target = $region5
    $region4: #{tpu_custom_call.1} parent=1 // pred_region
      _
    $region5: #{tpu_custom_call.1} parent=1 // pred_fallthru
      _
    // Predicated region
    $region6: #{tpu_custom_call.1} parent=1 // pred_check
      _
    $region7: #{tpu_custom_call.1} parent=1 // pred_check_branch
      %20 = sbr.rel (0) target = $region9
    $region8: #{tpu_custom_call.1} parent=1 // pred_region
      _
    $region9: #{tpu_custom_call.1} parent=1 // pred_fallthru
      _
    // Predicated region
    $region10: #{tpu_custom_call.1} parent=1 // pred_check
      _
    $region11: #{tpu_custom_call.1} parent=1 // pred_check_branch
      %22 = sbr.rel (0) target = $region13
    $region12: #{tpu_custom_call.1} parent=1 // pred_region
      _
    $region13: #{tpu_custom_call.1} parent=1 // pred_fallthru
      _
    // Predicated region
    $region14: #{tpu_custom_call.1} parent=1 // pred_check
      _
    $region15: #{tpu_custom_call.1} parent=1 // pred_check_branch
      %24 = sbr.rel (0) target = $region17
    $region16: #{tpu_custom_call.1} parent=1 // pred_region
      _
    $region17: #{tpu_custom_call.1} parent=1 // pred_fallthru
      _
    // Predicated region
    $region18: #{tpu_custom_call.1} parent=1 // pred_check
      _
    $region19: #{tpu_custom_call.1} parent=1 // pred_check_branch
      %26 = sbr.rel (0) target = $region21
    $region20: #{tpu_custom_call.1} parent=1 // pred_region
      _
    $region21: #{tpu_custom_call.1} parent=1 // pred_fallthru
      _
    // Predicated region
    $region22: #{tpu_custom_call.1} parent=1 // pred_check
      _
    $region23: #{tpu_custom_call.1} parent=1 // pred_check_branch
      %28 = sbr.rel (0) target = $region25
    $region24: #{tpu_custom_call.1} parent=1 // pred_region
      _
    $region25: #{tpu_custom_call.1} parent=1 // pred_fallthru
      _
    // Predicated region
    $region26: #{tpu_custom_call.1} parent=1 // pred_check
      _
    $region27: #{tpu_custom_call.1} parent=1 // pred_check_branch
      %30 = sbr.rel (0) target = $region29
    $region28: #{tpu_custom_call.1} parent=1 // pred_region
      _
    $region29: #{tpu_custom_call.1} parent=1 // pred_fallthru
      _
    // Predicated region
    $region30: #{tpu_custom_call.1} parent=1 // pred_check
      _
    $region31: #{tpu_custom_call.1} parent=1 // pred_check_branch
      %32 = sbr.rel (0) target = $region33
    $region32: #{tpu_custom_call.1} parent=1 // pred_region
      _
    $region33: #{tpu_custom_call.1} parent=1 // pred_fallthru
      _
    // Predicated region
    $region34: #{tpu_custom_call.1} parent=1 // pred_check
      _
    $region35: #{tpu_custom_call.1} parent=1 // pred_check_branch
      %34 = sbr.rel (0) target = $region37
    $region36: #{tpu_custom_call.1} parent=1 // pred_region
      _
    $region37: #{tpu_custom_call.1} parent=1 // pred_fallthru
      _
    %v35 = vld [vmem:[%s8] sm:$0xff]
    %v36 = vld [vmem:[%s0] sm:$0x1]
    %v37 = vld [vmem:[%s1] sm:$0x1]
    %v38 = vld [vmem:[%s2] sm:$0xff]
    %v39 = vld [vmem:[%s3] sm:$0x1]
    %v41 = vlaneseq
    %v42 = vshrl.u32 %v41, 7
    %v43 = vsub.s32 0, %v42
    %v44 = vrot.slane %v39, %v43
    %vm46 = vcmask 64512
    %v48 = vsel %vm46, %v35, 0
    %50 = vmatprep.subr.mxu0 0.0
    %51 = vmatpush1.msra.mxu0 0.0
    %52 = vmatprep.subr.mxu0 0.0
    %53 = vmatpush1.msra.mxu0 0.0
    %54 = vmatprep.subr.mxu0 0.0
    %55 = vmatpush1.msra.mxu0 0.0
    %56 = vmatprep.subr.mxu0 0.0
    %57 = vmatpush1.msra.mxu0 0.0
    %58 = vmatprep.subr.mxu0 0.0
    %59 = vmatpush1.msra.mxu0 0.0
    %60 = vmatprep.subr.mxu0 0.0
    %61 = vmatpush1.msra.mxu0 0.0
    %62 = vmatprep.subr.mxu0 0.0
    %63 = vmatpush1.msra.mxu0 0.0
    %64 = vmatprep.subr.mxu0 0.0
    %65 = vmatpush1.msra.mxu0 0.0
    %66 = vmatprep.subr.mxu0 0.0
    %67 = vmatpush1.msra.mxu0 0.0
    %68 = vmatprep.subr.mxu0 0.0
    %69 = vmatpush1.msra.mxu0 0.0
    %70 = vmatprep.subr.mxu0 0.0
    %71 = vmatpush1.msra.mxu0 0.0
    %72 = vmatprep.subr.mxu0 0.0
    %73 = vmatpush1.msra.mxu0 0.0
    %74 = vmatprep.subr.mxu0 0.0
    %75 = vmatpush1.msra.mxu0 0.0
    %76 = vmatprep.subr.mxu0 0.0
    %77 = vmatpush1.msra.mxu0 0.0
    %78 = vmatprep.subr.mxu0 0.0
    %79 = vmatpush1.msra.mxu0 0.0
    %80 = vmatprep.subr.mxu0 0.0
    %81 = vmatpush1.msra.mxu0 %v38
    %82 = vmatprep.subr.mxu0 0.0
    %83 = vmatpush2.msra.mxu0 0.0
    %84 = vmatprep.subr.mxu0 0.0
    %85 = vmatpush2.msra.mxu0 0.0
    %86 = vmatprep.subr.mxu0 0.0
    %87 = vmatpush2.msra.mxu0 0.0
    %88 = vmatprep.subr.mxu0 0.0
    %89 = vmatpush2.msra.mxu0 0.0
    %90 = vmatprep.subr.mxu0 0.0
    %91 = vmatpush2.msra.mxu0 0.0
    %92 = vmatprep.subr.mxu0 0.0
    %93 = vmatpush2.msra.mxu0 0.0
    %94 = vmatprep.subr.mxu0 0.0
    %95 = vmatpush2.msra.mxu0 0.0
    %96 = vmatprep.subr.mxu0 0.0
    %97 = vmatpush2.msra.mxu0 0.0
    %98 = vmatprep.subr.mxu0 0.0
    %99 = vmatpush2.msra.mxu0 0.0
    %100 = vmatprep.subr.mxu0 0.0
    %101 = vmatpush2.msra.mxu0 0.0
    %102 = vmatprep.subr.mxu0 0.0
    %103 = vmatpush2.msra.mxu0 0.0
    %104 = vmatprep.subr.mxu0 0.0
    %105 = vmatpush2.msra.mxu0 0.0
    %106 = vmatprep.subr.mxu0 0.0
    %107 = vmatpush2.msra.mxu0 0.0
    %108 = vmatprep.subr.mxu0 0.0
    %109 = vmatpush2.msra.mxu0 0.0
    %110 = vmatprep.subr.mxu0 0.0
    %111 = vmatpush2.msra.mxu0 0.0
    %112 = vmatprep.subr.mxu0 0.0
    %113 = vmatpush2.msra.mxu0 0.0
    %114 = vmatprep.mubr.f32.mxu0 0.0
    %115 = vmatmul.mubr.f32.gmra.mxu0 %v48
    %v116 = vpop.f32.mrf.mxu0
    %v117 = vadd.f32 %v44, %v116
    %v118 = vpop.f32.mrf.mxu0
    %119 = vdwg.mxu0
    %v120 = vtanh.pop %v117
    %v121 = vld [vmem:[%s4] sm:$0xff]
    %v122 = vld [vmem:[%s4 + $0x8] sm:$0xff]
    %v123 = vld [vmem:[%s4 + $0x10] sm:$0xff]
    %v124 = vld [vmem:[%s4 + $0x18] sm:$0xff]
    %v125 = vld [vmem:[%s4 + $0x20] sm:$0xff]
    %v126 = vld [vmem:[%s4 + $0x28] sm:$0xff]
    %v127 = vld [vmem:[%s4 + $0x30] sm:$0xff]
    %v128 = vld [vmem:[%s4 + $0x38] sm:$0xff]
    %v129 = vld [vmem:[%s5] sm:$0x1]
    %v131 = vlaneseq
    %v132 = vshrl.u32 %v131, 7
    %v133 = vsub.s32 0, %v132
    %v134 = vrot.slane %v129, %v133
    %vm136 = vcmask 523264
    %v138 = vsel %vm136, %v120, 0
    %140 = vmatprep.subr.mxu0 0.0
    %141 = vmatpush1.msra.mxu0 0.0
    %142 = vmatprep.subr.mxu0 0.0
    %143 = vmatpush1.msra.mxu0 0.0
    %144 = vmatprep.subr.mxu0 0.0
    %145 = vmatpush1.msra.mxu0 0.0
    %146 = vmatprep.subr.mxu0 0.0
    %147 = vmatpush1.msra.mxu0 0.0
    %148 = vmatprep.subr.mxu0 0.0
    %149 = vmatpush1.msra.mxu0 0.0
    %150 = vmatprep.subr.mxu0 0.0
    %151 = vmatpush1.msra.mxu0 0.0
    %152 = vmatprep.subr.mxu0 0.0
    %153 = vmatpush1.msra.mxu0 0.0
    %154 = vmatprep.subr.mxu0 0.0
    %155 = vmatpush1.msra.mxu0 0.0
    %156 = vmatprep.subr.mxu0 0.0
    %157 = vmatpush1.msra.mxu0 %v128
    %158 = vmatprep.subr.mxu0 0.0
    %159 = vmatpush1.msra.mxu0 %v127
    %160 = vmatprep.subr.mxu0 0.0
    %161 = vmatpush1.msra.mxu0 %v126
    %162 = vmatprep.subr.mxu0 0.0
    %163 = vmatpush1.msra.mxu0 %v125
    %164 = vmatprep.subr.mxu0 0.0
    %165 = vmatpush1.msra.mxu0 %v124
    %166 = vmatprep.subr.mxu0 0.0
    %167 = vmatpush1.msra.mxu0 %v123
    %168 = vmatprep.subr.mxu0 0.0
    %169 = vmatpush1.msra.mxu0 %v122
    %170 = vmatprep.subr.mxu0 0.0
    %171 = vmatpush1.msra.mxu0 %v121
    %172 = vmatprep.subr.mxu0 0.0
    %173 = vmatpush2.msra.mxu0 0.0
    %174 = vmatprep.subr.mxu0 0.0
    %175 = vmatpush2.msra.mxu0 0.0
    %176 = vmatprep.subr.mxu0 0.0
    %177 = vmatpush2.msra.mxu0 0.0
    %178 = vmatprep.subr.mxu0 0.0
    %179 = vmatpush2.msra.mxu0 0.0
    %180 = vmatprep.subr.mxu0 0.0
    %181 = vmatpush2.msra.mxu0 0.0
    %182 = vmatprep.subr.mxu0 0.0
    %183 = vmatpush2.msra.mxu0 0.0
    %184 = vmatprep.subr.mxu0 0.0
    %185 = vmatpush2.msra.mxu0 0.0
    %186 = vmatprep.subr.mxu0 0.0
    %187 = vmatpush2.msra.mxu0 0.0
    %188 = vmatprep.subr.mxu0 0.0
    %189 = vmatpush2.msra.mxu0 0.0
    %190 = vmatprep.subr.mxu0 0.0
    %191 = vmatpush2.msra.mxu0 0.0
    %192 = vmatprep.subr.mxu0 0.0
    %193 = vmatpush2.msra.mxu0 0.0
    %194 = vmatprep.subr.mxu0 0.0
    %195 = vmatpush2.msra.mxu0 0.0
    %196 = vmatprep.subr.mxu0 0.0
    %197 = vmatpush2.msra.mxu0 0.0
    %198 = vmatprep.subr.mxu0 0.0
    %199 = vmatpush2.msra.mxu0 0.0
    %200 = vmatprep.subr.mxu0 0.0
    %201 = vmatpush2.msra.mxu0 0.0
    %202 = vmatprep.subr.mxu0 0.0
    %203 = vmatpush2.msra.mxu0 0.0
    %204 = vmatprep.mubr.f32.mxu0 0.0
    %205 = vmatmul.mubr.f32.gmra.mxu0 %v138
    %v206 = vpop.f32.mrf.mxu0
    %v207 = vadd.f32 %v134, %v206
    %v208 = vpop.f32.mrf.mxu0
    %209 = vdwg.mxu0
    %v210 = vtanh.pop %v207
    %v211 = vld [vmem:[%s6] sm:$0xff]
    %v212 = vld [vmem:[%s6 + $0x8] sm:$0xff]
    %v213 = vld [vmem:[%s6 + $0x10] sm:$0xff]
    %v214 = vld [vmem:[%s6 + $0x18] sm:$0xff]
    %v215 = vld [vmem:[%s6 + $0x20] sm:$0xff]
    %v216 = vld [vmem:[%s6 + $0x28] sm:$0xff]
    %v217 = vld [vmem:[%s6 + $0x30] sm:$0xff]
    %v218 = vld [vmem:[%s6 + $0x38] sm:$0xff]
    %v219 = vld [vmem:[%s7] sm:$0x1]
    %v221 = vlaneseq
    %v222 = vshrl.u32 %v221, 7
    %v223 = vsub.s32 0, %v222
    %v224 = vrot.slane %v219, %v223
    %v227 = vsel %vm136, %v210, 0
    %229 = vmatprep.subr.mxu0 0.0
    %230 = vmatpush1.msra.mxu0 0.0
    %231 = vmatprep.subr.mxu0 0.0
    %232 = vmatpush1.msra.mxu0 0.0
    %233 = vmatprep.subr.mxu0 0.0
    %234 = vmatpush1.msra.mxu0 0.0
    %235 = vmatprep.subr.mxu0 0.0
    %236 = vmatpush1.msra.mxu0 0.0
    %237 = vmatprep.subr.mxu0 0.0
    %238 = vmatpush1.msra.mxu0 0.0
    %239 = vmatprep.subr.mxu0 0.0
    %240 = vmatpush1.msra.mxu0 0.0
    %241 = vmatprep.subr.mxu0 0.0
    %242 = vmatpush1.msra.mxu0 0.0
    %243 = vmatprep.subr.mxu0 0.0
    %244 = vmatpush1.msra.mxu0 0.0
    %245 = vmatprep.subr.mxu0 0.0
    %246 = vmatpush1.msra.mxu0 %v218
    %247 = vmatprep.subr.mxu0 0.0
    %248 = vmatpush1.msra.mxu0 %v217
    %249 = vmatprep.subr.mxu0 0.0
    %250 = vmatpush1.msra.mxu0 %v216
    %251 = vmatprep.subr.mxu0 0.0
    %252 = vmatpush1.msra.mxu0 %v215
    %253 = vmatprep.subr.mxu0 0.0
    %254 = vmatpush1.msra.mxu0 %v214
    %255 = vmatprep.subr.mxu0 0.0
    %256 = vmatpush1.msra.mxu0 %v213
    %257 = vmatprep.subr.mxu0 0.0
    %258 = vmatpush1.msra.mxu0 %v212
    %259 = vmatprep.subr.mxu0 0.0
    %260 = vmatpush1.msra.mxu0 %v211
    %261 = vmatprep.subr.mxu0 0.0
    %262 = vmatpush2.msra.mxu0 0.0
    %263 = vmatprep.subr.mxu0 0.0
    %264 = vmatpush2.msra.mxu0 0.0
    %265 = vmatprep.subr.mxu0 0.0
    %266 = vmatpush2.msra.mxu0 0.0
    %267 = vmatprep.subr.mxu0 0.0
    %268 = vmatpush2.msra.mxu0 0.0
    %269 = vmatprep.subr.mxu0 0.0
    %270 = vmatpush2.msra.mxu0 0.0
    %271 = vmatprep.subr.mxu0 0.0
    %272 = vmatpush2.msra.mxu0 0.0
    %273 = vmatprep.subr.mxu0 0.0
    %274 = vmatpush2.msra.mxu0 0.0
    %275 = vmatprep.subr.mxu0 0.0
    %276 = vmatpush2.msra.mxu0 0.0
    %277 = vmatprep.subr.mxu0 0.0
    %278 = vmatpush2.msra.mxu0 0.0
    %279 = vmatprep.subr.mxu0 0.0
    %280 = vmatpush2.msra.mxu0 0.0
    %281 = vmatprep.subr.mxu0 0.0
    %282 = vmatpush2.msra.mxu0 0.0
    %283 = vmatprep.subr.mxu0 0.0
    %284 = vmatpush2.msra.mxu0 0.0
    %285 = vmatprep.subr.mxu0 0.0
    %286 = vmatpush2.msra.mxu0 0.0
    %287 = vmatprep.subr.mxu0 0.0
    %288 = vmatpush2.msra.mxu0 0.0
    %289 = vmatprep.subr.mxu0 0.0
    %290 = vmatpush2.msra.mxu0 0.0
    %291 = vmatprep.subr.mxu0 0.0
    %292 = vmatpush2.msra.mxu0 0.0
    %293 = vmatprep.mubr.f32.mxu0 0.0
    %294 = vmatmul.mubr.f32.gmra.mxu0 %v227
    %v295 = vpop.f32.mrf.mxu0
    %v296 = vadd.f32 %v224, %v295
    %v297 = vpop.f32.mrf.mxu0
    %298 = vdwg.mxu0
    %v300 = vlaneseq
    %v301 = vshrl.u32 %v300, 7
    %v302 = vsub.s32 0, %v301
    %v303 = vrot.slane %v36, %v302
    %v305 = vmul.f32 %v303, %v35
    %v306 = vmul.f32 %v296, 1.442695
    %v307 = vpow.pop %v306
    %v308 = vmul.f32 %v35, %v307
    %310 = vrot.lane.b32.xlu0 %v296, 120
    %v311 = vpop.permute.xlu0 %310
    %v313 = vadd.f32 %v308, %v311
    %v315 = vlaneseq
    %v316 = vshrl.u32 %v315, 7
    %v317 = vsub.s32 0, %v316
    %v318 = vrot.slane %v37, %v317
    %v320 = vmul.f32 %v318, %v313
    %v321 = vadd.f32 %v305, %v320
    %v322 = vmul.f32 %v318, %v296
    %v323 = vadd.f32 %v322, 0.0
    %s324 = scalar_lea.vmem %s0, 1
    %v325 = vld [vmem:[%s324] sm:$0x1]
    %s326 = scalar_lea.vmem %s1, 1
    %v327 = vld [vmem:[%s326] sm:$0x1]
    %s328 = scalar_lea.vmem %s2, 8
    %v329 = vld [vmem:[%s328] sm:$0xff]
    %s330 = scalar_lea.vmem %s3, 1
    %v331 = vld [vmem:[%s330] sm:$0x1]
    %v333 = vlaneseq
    %v334 = vshrl.u32 %v333, 7
    %v335 = vsub.s32 0, %v334
    %v336 = vrot.slane %v331, %v335
    %v339 = vsel %vm46, %v321, 0
    %341 = vmatprep.subr.mxu0 0.0
    %342 = vmatpush1.msra.mxu0 0.0
    %343 = vmatprep.subr.mxu0 0.0
    %344 = vmatpush1.msra.mxu0 0.0
    %345 = vmatprep.subr.mxu0 0.0
    %346 = vmatpush1.msra.mxu0 0.0
    %347 = vmatprep.subr.mxu0 0.0
    %348 = vmatpush1.msra.mxu0 0.0
    %349 = vmatprep.subr.mxu0 0.0
    %350 = vmatpush1.msra.mxu0 0.0
    %351 = vmatprep.subr.mxu0 0.0
    %352 = vmatpush1.msra.mxu0 0.0
    %353 = vmatprep.subr.mxu0 0.0
    %354 = vmatpush1.msra.mxu0 0.0
    %355 = vmatprep.subr.mxu0 0.0
    %356 = vmatpush1.msra.mxu0 0.0
    %357 = vmatprep.subr.mxu0 0.0
    %358 = vmatpush1.msra.mxu0 0.0
    %359 = vmatprep.subr.mxu0 0.0
    %360 = vmatpush1.msra.mxu0 0.0
    %361 = vmatprep.subr.mxu0 0.0
    %362 = vmatpush1.msra.mxu0 0.0
    %363 = vmatprep.subr.mxu0 0.0
    %364 = vmatpush1.msra.mxu0 0.0
    %365 = vmatprep.subr.mxu0 0.0
    %366 = vmatpush1.msra.mxu0 0.0
    %367 = vmatprep.subr.mxu0 0.0
    %368 = vmatpush1.msra.mxu0 0.0
    %369 = vmatprep.subr.mxu0 0.0
    %370 = vmatpush1.msra.mxu0 0.0
    %371 = vmatprep.subr.mxu0 0.0
    %372 = vmatpush1.msra.mxu0 %v329
    %373 = vmatprep.subr.mxu0 0.0
    %374 = vmatpush2.msra.mxu0 0.0
    %375 = vmatprep.subr.mxu0 0.0
    %376 = vmatpush2.msra.mxu0 0.0
    %377 = vmatprep.subr.mxu0 0.0
    %378 = vmatpush2.msra.mxu0 0.0
    %379 = vmatprep.subr.mxu0 0.0
    %380 = vmatpush2.msra.mxu0 0.0
    %381 = vmatprep.subr.mxu0 0.0
    %382 = vmatpush2.msra.mxu0 0.0
    %383 = vmatprep.subr.mxu0 0.0
    %384 = vmatpush2.msra.mxu0 0.0
    %385 = vmatprep.subr.mxu0 0.0
    %386 = vmatpush2.msra.mxu0 0.0
    %387 = vmatprep.subr.mxu0 0.0
    %388 = vmatpush2.msra.mxu0 0.0
    %389 = vmatprep.subr.mxu0 0.0
    %390 = vmatpush2.msra.mxu0 0.0
    %391 = vmatprep.subr.mxu0 0.0
    %392 = vmatpush2.msra.mxu0 0.0
    %393 = vmatprep.subr.mxu0 0.0
    %394 = vmatpush2.msra.mxu0 0.0
    %395 = vmatprep.subr.mxu0 0.0
    %396 = vmatpush2.msra.mxu0 0.0
    %397 = vmatprep.subr.mxu0 0.0
    %398 = vmatpush2.msra.mxu0 0.0
    %399 = vmatprep.subr.mxu0 0.0
    %400 = vmatpush2.msra.mxu0 0.0
    %401 = vmatprep.subr.mxu0 0.0
    %402 = vmatpush2.msra.mxu0 0.0
    %403 = vmatprep.subr.mxu0 0.0
    %404 = vmatpush2.msra.mxu0 0.0
    %405 = vmatprep.mubr.f32.mxu0 0.0
    %406 = vmatmul.mubr.f32.gmra.mxu0 %v339
    %v407 = vpop.f32.mrf.mxu0
    %v408 = vadd.f32 %v336, %v407
    %v409 = vpop.f32.mrf.mxu0
    %410 = vdwg.mxu0
    %v411 = vtanh.pop %v408
    %s412 = scalar_lea.vmem %s4, 64
    %v413 = vld [vmem:[%s412] sm:$0xff]
    %v414 = vld [vmem:[%s412 + $0x8] sm:$0xff]
    %v415 = vld [vmem:[%s412 + $0x10] sm:$0xff]
    %v416 = vld [vmem:[%s412 + $0x18] sm:$0xff]
    %v417 = vld [vmem:[%s412 + $0x20] sm:$0xff]
    %v418 = vld [vmem:[%s412 + $0x28] sm:$0xff]
    %v419 = vld [vmem:[%s412 + $0x30] sm:$0xff]
    %v420 = vld [vmem:[%s412 + $0x38] sm:$0xff]
    %s421 = scalar_lea.vmem %s5, 1
    %v422 = vld [vmem:[%s421] sm:$0x1]
    %v424 = vlaneseq
    %v425 = vshrl.u32 %v424, 7
    %v426 = vsub.s32 0, %v425
    %v427 = vrot.slane %v422, %v426
    %v430 = vsel %vm136, %v411, 0
    %432 = vmatprep.subr.mxu0 0.0
    %433 = vmatpush1.msra.mxu0 0.0
    %434 = vmatprep.subr.mxu0 0.0
    %435 = vmatpush1.msra.mxu0 0.0
    %436 = vmatprep.subr.mxu0 0.0
    %437 = vmatpush1.msra.mxu0 0.0
    %438 = vmatprep.subr.mxu0 0.0
    %439 = vmatpush1.msra.mxu0 0.0
    %440 = vmatprep.subr.mxu0 0.0
    %441 = vmatpush1.msra.mxu0 0.0
    %442 = vmatprep.subr.mxu0 0.0
    %443 = vmatpush1.msra.mxu0 0.0
    %444 = vmatprep.subr.mxu0 0.0
    %445 = vmatpush1.msra.mxu0 0.0
    %446 = vmatprep.subr.mxu0 0.0
    %447 = vmatpush1.msra.mxu0 0.0
    %448 = vmatprep.subr.mxu0 0.0
    %449 = vmatpush1.msra.mxu0 %v420
    %450 = vmatprep.subr.mxu0 0.0
    %451 = vmatpush1.msra.mxu0 %v419
    %452 = vmatprep.subr.mxu0 0.0
    %453 = vmatpush1.msra.mxu0 %v418
    %454 = vmatprep.subr.mxu0 0.0
    %455 = vmatpush1.msra.mxu0 %v417
    %456 = vmatprep.subr.mxu0 0.0
    %457 = vmatpush1.msra.mxu0 %v416
    %458 = vmatprep.subr.mxu0 0.0
    %459 = vmatpush1.msra.mxu0 %v415
    %460 = vmatprep.subr.mxu0 0.0
    %461 = vmatpush1.msra.mxu0 %v414
    %462 = vmatprep.subr.mxu0 0.0
    %463 = vmatpush1.msra.mxu0 %v413
    %464 = vmatprep.subr.mxu0 0.0
    %465 = vmatpush2.msra.mxu0 0.0
    %466 = vmatprep.subr.mxu0 0.0
    %467 = vmatpush2.msra.mxu0 0.0
    %468 = vmatprep.subr.mxu0 0.0
    %469 = vmatpush2.msra.mxu0 0.0
    %470 = vmatprep.subr.mxu0 0.0
    %471 = vmatpush2.msra.mxu0 0.0
    %472 = vmatprep.subr.mxu0 0.0
    %473 = vmatpush2.msra.mxu0 0.0
    %474 = vmatprep.subr.mxu0 0.0
    %475 = vmatpush2.msra.mxu0 0.0
    %476 = vmatprep.subr.mxu0 0.0
    %477 = vmatpush2.msra.mxu0 0.0
    %478 = vmatprep.subr.mxu0 0.0
    %479 = vmatpush2.msra.mxu0 0.0
    %480 = vmatprep.subr.mxu0 0.0
    %481 = vmatpush2.msra.mxu0 0.0
    %482 = vmatprep.subr.mxu0 0.0
    %483 = vmatpush2.msra.mxu0 0.0
    %484 = vmatprep.subr.mxu0 0.0
    %485 = vmatpush2.msra.mxu0 0.0
    %486 = vmatprep.subr.mxu0 0.0
    %487 = vmatpush2.msra.mxu0 0.0
    %488 = vmatprep.subr.mxu0 0.0
    %489 = vmatpush2.msra.mxu0 0.0
    %490 = vmatprep.subr.mxu0 0.0
    %491 = vmatpush2.msra.mxu0 0.0
    %492 = vmatprep.subr.mxu0 0.0
    %493 = vmatpush2.msra.mxu0 0.0
    %494 = vmatprep.subr.mxu0 0.0
    %495 = vmatpush2.msra.mxu0 0.0
    %496 = vmatprep.mubr.f32.mxu0 0.0
    %497 = vmatmul.mubr.f32.gmra.mxu0 %v430
    %v498 = vpop.f32.mrf.mxu0
    %v499 = vadd.f32 %v427, %v498
    %v500 = vpop.f32.mrf.mxu0
    %501 = vdwg.mxu0
    %v502 = vtanh.pop %v499
    %s503 = scalar_lea.vmem %s6, 64
    %v504 = vld [vmem:[%s503] sm:$0xff]
    %v505 = vld [vmem:[%s503 + $0x8] sm:$0xff]
    %v506 = vld [vmem:[%s503 + $0x10] sm:$0xff]
    %v507 = vld [vmem:[%s503 + $0x18] sm:$0xff]
    %v508 = vld [vmem:[%s503 + $0x20] sm:$0xff]
    %v509 = vld [vmem:[%s503 + $0x28] sm:$0xff]
    %v510 = vld [vmem:[%s503 + $0x30] sm:$0xff]
    %v511 = vld [vmem:[%s503 + $0x38] sm:$0xff]
    %s512 = scalar_lea.vmem %s7, 1
    %v513 = vld [vmem:[%s512] sm:$0x1]
    %v515 = vlaneseq
    %v516 = vshrl.u32 %v515, 7
    %v517 = vsub.s32 0, %v516
    %v518 = vrot.slane %v513, %v517
    %v521 = vsel %vm136, %v502, 0
    %523 = vmatprep.subr.mxu0 0.0
    %524 = vmatpush1.msra.mxu0 0.0
    %525 = vmatprep.subr.mxu0 0.0
    %526 = vmatpush1.msra.mxu0 0.0
    %527 = vmatprep.subr.mxu0 0.0
    %528 = vmatpush1.msra.mxu0 0.0
    %529 = vmatprep.subr.mxu0 0.0
    %530 = vmatpush1.msra.mxu0 0.0
    %531 = vmatprep.subr.mxu0 0.0
    %532 = vmatpush1.msra.mxu0 0.0
    %533 = vmatprep.subr.mxu0 0.0
    %534 = vmatpush1.msra.mxu0 0.0
    %535 = vmatprep.subr.mxu0 0.0
    %536 = vmatpush1.msra.mxu0 0.0
    %537 = vmatprep.subr.mxu0 0.0
    %538 = vmatpush1.msra.mxu0 0.0
    %539 = vmatprep.subr.mxu0 0.0
    %540 = vmatpush1.msra.mxu0 %v511
    %541 = vmatprep.subr.mxu0 0.0
    %542 = vmatpush1.msra.mxu0 %v510
    %543 = vmatprep.subr.mxu0 0.0
    %544 = vmatpush1.msra.mxu0 %v509
    %545 = vmatprep.subr.mxu0 0.0
    %546 = vmatpush1.msra.mxu0 %v508
    %547 = vmatprep.subr.mxu0 0.0
    %548 = vmatpush1.msra.mxu0 %v507
    %549 = vmatprep.subr.mxu0 0.0
    %550 = vmatpush1.msra.mxu0 %v506
    %551 = vmatprep.subr.mxu0 0.0
    %552 = vmatpush1.msra.mxu0 %v505
    %553 = vmatprep.subr.mxu0 0.0
    %554 = vmatpush1.msra.mxu0 %v504
    %555 = vmatprep.subr.mxu0 0.0
    %556 = vmatpush2.msra.mxu0 0.0
    %557 = vmatprep.subr.mxu0 0.0
    %558 = vmatpush2.msra.mxu0 0.0
    %559 = vmatprep.subr.mxu0 0.0
    %560 = vmatpush2.msra.mxu0 0.0
    %561 = vmatprep.subr.mxu0 0.0
    %562 = vmatpush2.msra.mxu0 0.0
    %563 = vmatprep.subr.mxu0 0.0
    %564 = vmatpush2.msra.mxu0 0.0
    %565 = vmatprep.subr.mxu0 0.0
    %566 = vmatpush2.msra.mxu0 0.0
    %567 = vmatprep.subr.mxu0 0.0
    %568 = vmatpush2.msra.mxu0 0.0
    %569 = vmatprep.subr.mxu0 0.0
    %570 = vmatpush2.msra.mxu0 0.0
    %571 = vmatprep.subr.mxu0 0.0
    %572 = vmatpush2.msra.mxu0 0.0
    %573 = vmatprep.subr.mxu0 0.0
    %574 = vmatpush2.msra.mxu0 0.0
    %575 = vmatprep.subr.mxu0 0.0
    %576 = vmatpush2.msra.mxu0 0.0
    %577 = vmatprep.subr.mxu0 0.0
    %578 = vmatpush2.msra.mxu0 0.0
    %579 = vmatprep.subr.mxu0 0.0
    %580 = vmatpush2.msra.mxu0 0.0
    %581 = vmatprep.subr.mxu0 0.0
    %582 = vmatpush2.msra.mxu0 0.0
    %583 = vmatprep.subr.mxu0 0.0
    %584 = vmatpush2.msra.mxu0 0.0
    %585 = vmatprep.subr.mxu0 0.0
    %586 = vmatpush2.msra.mxu0 0.0
    %587 = vmatprep.mubr.f32.mxu0 0.0
    %588 = vmatmul.mubr.f32.gmra.mxu0 %v521
    %v589 = vpop.f32.mrf.mxu0
    %v590 = vadd.f32 %v518, %v589
    %v591 = vpop.f32.mrf.mxu0
    %592 = vdwg.mxu0
    %v594 = vlaneseq
    %v595 = vshrl.u32 %v594, 7
    %v596 = vsub.s32 0, %v595
    %v597 = vrot.slane %v325, %v596
    %v599 = vmul.f32 %v597, %v321
    %v600 = vmul.f32 %v590, 1.442695
    %v601 = vpow.pop %v600
    %v602 = vmul.f32 %v321, %v601
    %604 = vrot.lane.b32.xlu0 %v590, 120
    %v605 = vpop.permute.xlu0 %604
    %v607 = vadd.f32 %v602, %v605
    %v609 = vlaneseq
    %v610 = vshrl.u32 %v609, 7
    %v611 = vsub.s32 0, %v610
    %v612 = vrot.slane %v327, %v611
    %v614 = vmul.f32 %v612, %v607
    %v615 = vadd.f32 %v599, %v614
    %v616 = vmul.f32 %v612, %v590
    %v617 = vadd.f32 %v323, %v616
    %s618 = scalar_lea.vmem %s0, 2
    %v619 = vld [vmem:[%s618] sm:$0x1]
    %s620 = scalar_lea.vmem %s1, 2
    %v621 = vld [vmem:[%s620] sm:$0x1]
    %s622 = scalar_lea.vmem %s2, 16
    %v623 = vld [vmem:[%s622] sm:$0xff]
    %s624 = scalar_lea.vmem %s3, 2
    %v625 = vld [vmem:[%s624] sm:$0x1]
    %v627 = vlaneseq
    %v628 = vshrl.u32 %v627, 7
    %v629 = vsub.s32 0, %v628
    %v630 = vrot.slane %v625, %v629
    %v633 = vsel %vm46, %v615, 0
    %635 = vmatprep.subr.mxu0 0.0
    %636 = vmatpush1.msra.mxu0 0.0
    %637 = vmatprep.subr.mxu0 0.0
    %638 = vmatpush1.msra.mxu0 0.0
    %639 = vmatprep.subr.mxu0 0.0
    %640 = vmatpush1.msra.mxu0 0.0
    %641 = vmatprep.subr.mxu0 0.0
    %642 = vmatpush1.msra.mxu0 0.0
    %643 = vmatprep.subr.mxu0 0.0
    %644 = vmatpush1.msra.mxu0 0.0
    %645 = vmatprep.subr.mxu0 0.0
    %646 = vmatpush1.msra.mxu0 0.0
    %647 = vmatprep.subr.mxu0 0.0
    %648 = vmatpush1.msra.mxu0 0.0
    %649 = vmatprep.subr.mxu0 0.0
    %650 = vmatpush1.msra.mxu0 0.0
    %651 = vmatprep.subr.mxu0 0.0
    %652 = vmatpush1.msra.mxu0 0.0
    %653 = vmatprep.subr.mxu0 0.0
    %654 = vmatpush1.msra.mxu0 0.0
    %655 = vmatprep.subr.mxu0 0.0
    %656 = vmatpush1.msra.mxu0 0.0
    %657 = vmatprep.subr.mxu0 0.0
    %658 = vmatpush1.msra.mxu0 0.0
    %659 = vmatprep.subr.mxu0 0.0
    %660 = vmatpush1.msra.mxu0 0.0
    %661 = vmatprep.subr.mxu0 0.0
    %662 = vmatpush1.msra.mxu0 0.0
    %663 = vmatprep.subr.mxu0 0.0
    %664 = vmatpush1.msra.mxu0 0.0
    %665 = vmatprep.subr.mxu0 0.0
    %666 = vmatpush1.msra.mxu0 %v623
    %667 = vmatprep.subr.mxu0 0.0
    %668 = vmatpush2.msra.mxu0 0.0
    %669 = vmatprep.subr.mxu0 0.0
    %670 = vmatpush2.msra.mxu0 0.0
    %671 = vmatprep.subr.mxu0 0.0
    %672 = vmatpush2.msra.mxu0 0.0
    %673 = vmatprep.subr.mxu0 0.0
    %674 = vmatpush2.msra.mxu0 0.0
    %675 = vmatprep.subr.mxu0 0.0
    %676 = vmatpush2.msra.mxu0 0.0
    %677 = vmatprep.subr.mxu0 0.0
    %678 = vmatpush2.msra.mxu0 0.0
    %679 = vmatprep.subr.mxu0 0.0
    %680 = vmatpush2.msra.mxu0 0.0
    %681 = vmatprep.subr.mxu0 0.0
    %682 = vmatpush2.msra.mxu0 0.0
    %683 = vmatprep.subr.mxu0 0.0
    %684 = vmatpush2.msra.mxu0 0.0
    %685 = vmatprep.subr.mxu0 0.0
    %686 = vmatpush2.msra.mxu0 0.0
    %687 = vmatprep.subr.mxu0 0.0
    %688 = vmatpush2.msra.mxu0 0.0
    %689 = vmatprep.subr.mxu0 0.0
    %690 = vmatpush2.msra.mxu0 0.0
    %691 = vmatprep.subr.mxu0 0.0
    %692 = vmatpush2.msra.mxu0 0.0
    %693 = vmatprep.subr.mxu0 0.0
    %694 = vmatpush2.msra.mxu0 0.0
    %695 = vmatprep.subr.mxu0 0.0
    %696 = vmatpush2.msra.mxu0 0.0
    %697 = vmatprep.subr.mxu0 0.0
    %698 = vmatpush2.msra.mxu0 0.0
    %699 = vmatprep.mubr.f32.mxu0 0.0
    %700 = vmatmul.mubr.f32.gmra.mxu0 %v633
    %v701 = vpop.f32.mrf.mxu0
    %v702 = vadd.f32 %v630, %v701
    %v703 = vpop.f32.mrf.mxu0
    %704 = vdwg.mxu0
    %v705 = vtanh.pop %v702
    %s706 = scalar_lea.vmem %s4, 128
    %v707 = vld [vmem:[%s706] sm:$0xff]
    %v708 = vld [vmem:[%s706 + $0x8] sm:$0xff]
    %v709 = vld [vmem:[%s706 + $0x10] sm:$0xff]
    %v710 = vld [vmem:[%s706 + $0x18] sm:$0xff]
    %v711 = vld [vmem:[%s706 + $0x20] sm:$0xff]
    %v712 = vld [vmem:[%s706 + $0x28] sm:$0xff]
    %v713 = vld [vmem:[%s706 + $0x30] sm:$0xff]
    %v714 = vld [vmem:[%s706 + $0x38] sm:$0xff]
    %s715 = scalar_lea.vmem %s5, 2
    %v716 = vld [vmem:[%s715] sm:$0x1]
    %v718 = vlaneseq
    %v719 = vshrl.u32 %v718, 7
    %v720 = vsub.s32 0, %v719
    %v721 = vrot.slane %v716, %v720
    %v724 = vsel %vm136, %v705, 0
    %726 = vmatprep.subr.mxu0 0.0
    %727 = vmatpush1.msra.mxu0 0.0
    %728 = vmatprep.subr.mxu0 0.0
    %729 = vmatpush1.msra.mxu0 0.0
    %730 = vmatprep.subr.mxu0 0.0
    %731 = vmatpush1.msra.mxu0 0.0
    %732 = vmatprep.subr.mxu0 0.0
    %733 = vmatpush1.msra.mxu0 0.0
    %734 = vmatprep.subr.mxu0 0.0
    %735 = vmatpush1.msra.mxu0 0.0
    %736 = vmatprep.subr.mxu0 0.0
    %737 = vmatpush1.msra.mxu0 0.0
    %738 = vmatprep.subr.mxu0 0.0
    %739 = vmatpush1.msra.mxu0 0.0
    %740 = vmatprep.subr.mxu0 0.0
    %741 = vmatpush1.msra.mxu0 0.0
    %742 = vmatprep.subr.mxu0 0.0
    %743 = vmatpush1.msra.mxu0 %v714
    %744 = vmatprep.subr.mxu0 0.0
    %745 = vmatpush1.msra.mxu0 %v713
    %746 = vmatprep.subr.mxu0 0.0
    %747 = vmatpush1.msra.mxu0 %v712
    %748 = vmatprep.subr.mxu0 0.0
    %749 = vmatpush1.msra.mxu0 %v711
    %750 = vmatprep.subr.mxu0 0.0
    %751 = vmatpush1.msra.mxu0 %v710
    %752 = vmatprep.subr.mxu0 0.0
    %753 = vmatpush1.msra.mxu0 %v709
    %754 = vmatprep.subr.mxu0 0.0
    %755 = vmatpush1.msra.mxu0 %v708
    %756 = vmatprep.subr.mxu0 0.0
    %757 = vmatpush1.msra.mxu0 %v707
    %758 = vmatprep.subr.mxu0 0.0
    %759 = vmatpush2.msra.mxu0 0.0
    %760 = vmatprep.subr.mxu0 0.0
    %761 = vmatpush2.msra.mxu0 0.0
    %762 = vmatprep.subr.mxu0 0.0
    %763 = vmatpush2.msra.mxu0 0.0
    %764 = vmatprep.subr.mxu0 0.0
    %765 = vmatpush2.msra.mxu0 0.0
    %766 = vmatprep.subr.mxu0 0.0
    %767 = vmatpush2.msra.mxu0 0.0
    %768 = vmatprep.subr.mxu0 0.0
    %769 = vmatpush2.msra.mxu0 0.0
    %770 = vmatprep.subr.mxu0 0.0
    %771 = vmatpush2.msra.mxu0 0.0
    %772 = vmatprep.subr.mxu0 0.0
    %773 = vmatpush2.msra.mxu0 0.0
    %774 = vmatprep.subr.mxu0 0.0
    %775 = vmatpush2.msra.mxu0 0.0
    %776 = vmatprep.subr.mxu0 0.0
    %777 = vmatpush2.msra.mxu0 0.0
    %778 = vmatprep.subr.mxu0 0.0
    %779 = vmatpush2.msra.mxu0 0.0
    %780 = vmatprep.subr.mxu0 0.0
    %781 = vmatpush2.msra.mxu0 0.0
    %782 = vmatprep.subr.mxu0 0.0
    %783 = vmatpush2.msra.mxu0 0.0
    %784 = vmatprep.subr.mxu0 0.0
    %785 = vmatpush2.msra.mxu0 0.0
    %786 = vmatprep.subr.mxu0 0.0
    %787 = vmatpush2.msra.mxu0 0.0
    %788 = vmatprep.subr.mxu0 0.0
    %789 = vmatpush2.msra.mxu0 0.0
    %790 = vmatprep.mubr.f32.mxu0 0.0
    %791 = vmatmul.mubr.f32.gmra.mxu0 %v724
    %v792 = vpop.f32.mrf.mxu0
    %v793 = vadd.f32 %v721, %v792
    %v794 = vpop.f32.mrf.mxu0
    %795 = vdwg.mxu0
    %v796 = vtanh.pop %v793
    %s797 = scalar_lea.vmem %s6, 128
    %v798 = vld [vmem:[%s797] sm:$0xff]
    %v799 = vld [vmem:[%s797 + $0x8] sm:$0xff]
    %v800 = vld [vmem:[%s797 + $0x10] sm:$0xff]
    %v801 = vld [vmem:[%s797 + $0x18] sm:$0xff]
    %v802 = vld [vmem:[%s797 + $0x20] sm:$0xff]
    %v803 = vld [vmem:[%s797 + $0x28] sm:$0xff]
    %v804 = vld [vmem:[%s797 + $0x30] sm:$0xff]
    %v805 = vld [vmem:[%s797 + $0x38] sm:$0xff]
    %s806 = scalar_lea.vmem %s7, 2
    %v807 = vld [vmem:[%s806] sm:$0x1]
    %v809 = vlaneseq
    %v810 = vshrl.u32 %v809, 7
    %v811 = vsub.s32 0, %v810
    %v812 = vrot.slane %v807, %v811
    %v815 = vsel %vm136, %v796, 0
    %817 = vmatprep.subr.mxu0 0.0
    %818 = vmatpush1.msra.mxu0 0.0
    %819 = vmatprep.subr.mxu0 0.0
    %820 = vmatpush1.msra.mxu0 0.0
    %821 = vmatprep.subr.mxu0 0.0
    %822 = vmatpush1.msra.mxu0 0.0
    %823 = vmatprep.subr.mxu0 0.0
    %824 = vmatpush1.msra.mxu0 0.0
    %825 = vmatprep.subr.mxu0 0.0
    %826 = vmatpush1.msra.mxu0 0.0
    %827 = vmatprep.subr.mxu0 0.0
    %828 = vmatpush1.msra.mxu0 0.0
    %829 = vmatprep.subr.mxu0 0.0
    %830 = vmatpush1.msra.mxu0 0.0
    %831 = vmatprep.subr.mxu0 0.0
    %832 = vmatpush1.msra.mxu0 0.0
    %833 = vmatprep.subr.mxu0 0.0
    %834 = vmatpush1.msra.mxu0 %v805
    %835 = vmatprep.subr.mxu0 0.0
    %836 = vmatpush1.msra.mxu0 %v804
    %837 = vmatprep.subr.mxu0 0.0
    %838 = vmatpush1.msra.mxu0 %v803
    %839 = vmatprep.subr.mxu0 0.0
    %840 = vmatpush1.msra.mxu0 %v802
    %841 = vmatprep.subr.mxu0 0.0
    %842 = vmatpush1.msra.mxu0 %v801
    %843 = vmatprep.subr.mxu0 0.0
    %844 = vmatpush1.msra.mxu0 %v800
    %845 = vmatprep.subr.mxu0 0.0
    %846 = vmatpush1.msra.mxu0 %v799
    %847 = vmatprep.subr.mxu0 0.0
    %848 = vmatpush1.msra.mxu0 %v798
    %849 = vmatprep.subr.mxu0 0.0
    %850 = vmatpush2.msra.mxu0 0.0
    %851 = vmatprep.subr.mxu0 0.0
    %852 = vmatpush2.msra.mxu0 0.0
    %853 = vmatprep.subr.mxu0 0.0
    %854 = vmatpush2.msra.mxu0 0.0
    %855 = vmatprep.subr.mxu0 0.0
    %856 = vmatpush2.msra.mxu0 0.0
    %857 = vmatprep.subr.mxu0 0.0
    %858 = vmatpush2.msra.mxu0 0.0
    %859 = vmatprep.subr.mxu0 0.0
    %860 = vmatpush2.msra.mxu0 0.0
    %861 = vmatprep.subr.mxu0 0.0
    %862 = vmatpush2.msra.mxu0 0.0
    %863 = vmatprep.subr.mxu0 0.0
    %864 = vmatpush2.msra.mxu0 0.0
    %865 = vmatprep.subr.mxu0 0.0
    %866 = vmatpush2.msra.mxu0 0.0
    %867 = vmatprep.subr.mxu0 0.0
    %868 = vmatpush2.msra.mxu0 0.0
    %869 = vmatprep.subr.mxu0 0.0
    %870 = vmatpush2.msra.mxu0 0.0
    %871 = vmatprep.subr.mxu0 0.0
    %872 = vmatpush2.msra.mxu0 0.0
    %873 = vmatprep.subr.mxu0 0.0
    %874 = vmatpush2.msra.mxu0 0.0
    %875 = vmatprep.subr.mxu0 0.0
    %876 = vmatpush2.msra.mxu0 0.0
    %877 = vmatprep.subr.mxu0 0.0
    %878 = vmatpush2.msra.mxu0 0.0
    %879 = vmatprep.subr.mxu0 0.0
    %880 = vmatpush2.msra.mxu0 0.0
    %881 = vmatprep.mubr.f32.mxu0 0.0
    %882 = vmatmul.mubr.f32.gmra.mxu0 %v815
    %v883 = vpop.f32.mrf.mxu0
    %v884 = vadd.f32 %v812, %v883
    %v885 = vpop.f32.mrf.mxu0
    %886 = vdwg.mxu0
    %v888 = vlaneseq
    %v889 = vshrl.u32 %v888, 7
    %v890 = vsub.s32 0, %v889
    %v891 = vrot.slane %v619, %v890
    %v893 = vmul.f32 %v891, %v615
    %v894 = vmul.f32 %v884, 1.442695
    %v895 = vpow.pop %v894
    %v896 = vmul.f32 %v615, %v895
    %898 = vrot.lane.b32.xlu0 %v884, 120
    %v899 = vpop.permute.xlu0 %898
    %v901 = vadd.f32 %v896, %v899
    %v903 = vlaneseq
    %v904 = vshrl.u32 %v903, 7
    %v905 = vsub.s32 0, %v904
    %v906 = vrot.slane %v621, %v905
    %v908 = vmul.f32 %v906, %v901
    %v909 = vadd.f32 %v893, %v908
    %v910 = vmul.f32 %v906, %v884
    %v911 = vadd.f32 %v617, %v910
    %s912 = scalar_lea.vmem %s0, 3
    %v913 = vld [vmem:[%s912] sm:$0x1]
    %s914 = scalar_lea.vmem %s1, 3
    %v915 = vld [vmem:[%s914] sm:$0x1]
    %s916 = scalar_lea.vmem %s2, 24
    %v917 = vld [vmem:[%s916] sm:$0xff]
    %s918 = scalar_lea.vmem %s3, 3
    %v919 = vld [vmem:[%s918] sm:$0x1]
    %v921 = vlaneseq
    %v922 = vshrl.u32 %v921, 7
    %v923 = vsub.s32 0, %v922
    %v924 = vrot.slane %v919, %v923
    %v927 = vsel %vm46, %v909, 0
    %929 = vmatprep.subr.mxu0 0.0
    %930 = vmatpush1.msra.mxu0 0.0
    %931 = vmatprep.subr.mxu0 0.0
    %932 = vmatpush1.msra.mxu0 0.0
    %933 = vmatprep.subr.mxu0 0.0
    %934 = vmatpush1.msra.mxu0 0.0
    %935 = vmatprep.subr.mxu0 0.0
    %936 = vmatpush1.msra.mxu0 0.0
    %937 = vmatprep.subr.mxu0 0.0
    %938 = vmatpush1.msra.mxu0 0.0
    %939 = vmatprep.subr.mxu0 0.0
    %940 = vmatpush1.msra.mxu0 0.0
    %941 = vmatprep.subr.mxu0 0.0
    %942 = vmatpush1.msra.mxu0 0.0
    %943 = vmatprep.subr.mxu0 0.0
    %944 = vmatpush1.msra.mxu0 0.0
    %945 = vmatprep.subr.mxu0 0.0
    %946 = vmatpush1.msra.mxu0 0.0
    %947 = vmatprep.subr.mxu0 0.0
    %948 = vmatpush1.msra.mxu0 0.0
    %949 = vmatprep.subr.mxu0 0.0
    %950 = vmatpush1.msra.mxu0 0.0
    %951 = vmatprep.subr.mxu0 0.0
    %952 = vmatpush1.msra.mxu0 0.0
    %953 = vmatprep.subr.mxu0 0.0
    %954 = vmatpush1.msra.mxu0 0.0
    %955 = vmatprep.subr.mxu0 0.0
    %956 = vmatpush1.msra.mxu0 0.0
    %957 = vmatprep.subr.mxu0 0.0
    %958 = vmatpush1.msra.mxu0 0.0
    %959 = vmatprep.subr.mxu0 0.0
    %960 = vmatpush1.msra.mxu0 %v917
    %961 = vmatprep.subr.mxu0 0.0
    %962 = vmatpush2.msra.mxu0 0.0
    %963 = vmatprep.subr.mxu0 0.0
    %964 = vmatpush2.msra.mxu0 0.0
    %965 = vmatprep.subr.mxu0 0.0
    %966 = vmatpush2.msra.mxu0 0.0
    %967 = vmatprep.subr.mxu0 0.0
    %968 = vmatpush2.msra.mxu0 0.0
    %969 = vmatprep.subr.mxu0 0.0
    %970 = vmatpush2.msra.mxu0 0.0
    %971 = vmatprep.subr.mxu0 0.0
    %972 = vmatpush2.msra.mxu0 0.0
    %973 = vmatprep.subr.mxu0 0.0
    %974 = vmatpush2.msra.mxu0 0.0
    %975 = vmatprep.subr.mxu0 0.0
    %976 = vmatpush2.msra.mxu0 0.0
    %977 = vmatprep.subr.mxu0 0.0
    %978 = vmatpush2.msra.mxu0 0.0
    %979 = vmatprep.subr.mxu0 0.0
    %980 = vmatpush2.msra.mxu0 0.0
    %981 = vmatprep.subr.mxu0 0.0
    %982 = vmatpush2.msra.mxu0 0.0
    %983 = vmatprep.subr.mxu0 0.0
    %984 = vmatpush2.msra.mxu0 0.0
    %985 = vmatprep.subr.mxu0 0.0
    %986 = vmatpush2.msra.mxu0 0.0
    %987 = vmatprep.subr.mxu0 0.0
    %988 = vmatpush2.msra.mxu0 0.0
    %989 = vmatprep.subr.mxu0 0.0
    %990 = vmatpush2.msra.mxu0 0.0
    %991 = vmatprep.subr.mxu0 0.0
    %992 = vmatpush2.msra.mxu0 0.0
    %993 = vmatprep.mubr.f32.mxu0 0.0
    %994 = vmatmul.mubr.f32.gmra.mxu0 %v927
    %v995 = vpop.f32.mrf.mxu0
    %v996 = vadd.f32 %v924, %v995
    %v997 = vpop.f32.mrf.mxu0
    %998 = vdwg.mxu0
    %v999 = vtanh.pop %v996
    %s1000 = scalar_lea.vmem %s4, 192
    %v1001 = vld [vmem:[%s1000] sm:$0xff]
    %v1002 = vld [vmem:[%s1000 + $0x8] sm:$0xff]
    %v1003 = vld [vmem:[%s1000 + $0x10] sm:$0xff]
    %v1004 = vld [vmem:[%s1000 + $0x18] sm:$0xff]
    %v1005 = vld [vmem:[%s1000 + $0x20] sm:$0xff]
    %v1006 = vld [vmem:[%s1000 + $0x28] sm:$0xff]
    %v1007 = vld [vmem:[%s1000 + $0x30] sm:$0xff]
    %v1008 = vld [vmem:[%s1000 + $0x38] sm:$0xff]
    %s1009 = scalar_lea.vmem %s5, 3
    %v1010 = vld [vmem:[%s1009] sm:$0x1]
    %v1012 = vlaneseq
    %v1013 = vshrl.u32 %v1012, 7
    %v1014 = vsub.s32 0, %v1013
    %v1015 = vrot.slane %v1010, %v1014
    %v1018 = vsel %vm136, %v999, 0
    %1020 = vmatprep.subr.mxu0 0.0
    %1021 = vmatpush1.msra.mxu0 0.0
    %1022 = vmatprep.subr.mxu0 0.0
    %1023 = vmatpush1.msra.mxu0 0.0
    %1024 = vmatprep.subr.mxu0 0.0
    %1025 = vmatpush1.msra.mxu0 0.0
    %1026 = vmatprep.subr.mxu0 0.0
    %1027 = vmatpush1.msra.mxu0 0.0
    %1028 = vmatprep.subr.mxu0 0.0
    %1029 = vmatpush1.msra.mxu0 0.0
    %1030 = vmatprep.subr.mxu0 0.0
    %1031 = vmatpush1.msra.mxu0 0.0
    %1032 = vmatprep.subr.mxu0 0.0
    %1033 = vmatpush1.msra.mxu0 0.0
    %1034 = vmatprep.subr.mxu0 0.0
    %1035 = vmatpush1.msra.mxu0 0.0
    %1036 = vmatprep.subr.mxu0 0.0
    %1037 = vmatpush1.msra.mxu0 %v1008
    %1038 = vmatprep.subr.mxu0 0.0
    %1039 = vmatpush1.msra.mxu0 %v1007
    %1040 = vmatprep.subr.mxu0 0.0
    %1041 = vmatpush1.msra.mxu0 %v1006
    %1042 = vmatprep.subr.mxu0 0.0
    %1043 = vmatpush1.msra.mxu0 %v1005
    %1044 = vmatprep.subr.mxu0 0.0
    %1045 = vmatpush1.msra.mxu0 %v1004
    %1046 = vmatprep.subr.mxu0 0.0
    %1047 = vmatpush1.msra.mxu0 %v1003
    %1048 = vmatprep.subr.mxu0 0.0
    %1049 = vmatpush1.msra.mxu0 %v1002
    %1050 = vmatprep.subr.mxu0 0.0
    %1051 = vmatpush1.msra.mxu0 %v1001
    %1052 = vmatprep.subr.mxu0 0.0
    %1053 = vmatpush2.msra.mxu0 0.0
    %1054 = vmatprep.subr.mxu0 0.0
    %1055 = vmatpush2.msra.mxu0 0.0
    %1056 = vmatprep.subr.mxu0 0.0
    %1057 = vmatpush2.msra.mxu0 0.0
    %1058 = vmatprep.subr.mxu0 0.0
    %1059 = vmatpush2.msra.mxu0 0.0
    %1060 = vmatprep.subr.mxu0 0.0
    %1061 = vmatpush2.msra.mxu0 0.0
    %1062 = vmatprep.subr.mxu0 0.0
    %1063 = vmatpush2.msra.mxu0 0.0
    %1064 = vmatprep.subr.mxu0 0.0
    %1065 = vmatpush2.msra.mxu0 0.0
    %1066 = vmatprep.subr.mxu0 0.0
    %1067 = vmatpush2.msra.mxu0 0.0
    %1068 = vmatprep.subr.mxu0 0.0
    %1069 = vmatpush2.msra.mxu0 0.0
    %1070 = vmatprep.subr.mxu0 0.0
    %1071 = vmatpush2.msra.mxu0 0.0
    %1072 = vmatprep.subr.mxu0 0.0
    %1073 = vmatpush2.msra.mxu0 0.0
    %1074 = vmatprep.subr.mxu0 0.0
    %1075 = vmatpush2.msra.mxu0 0.0
    %1076 = vmatprep.subr.mxu0 0.0
    %1077 = vmatpush2.msra.mxu0 0.0
    %1078 = vmatprep.subr.mxu0 0.0
    %1079 = vmatpush2.msra.mxu0 0.0
    %1080 = vmatprep.subr.mxu0 0.0
    %1081 = vmatpush2.msra.mxu0 0.0
    %1082 = vmatprep.subr.mxu0 0.0
    %1083 = vmatpush2.msra.mxu0 0.0
    %1084 = vmatprep.mubr.f32.mxu0 0.0
    %1085 = vmatmul.mubr.f32.gmra.mxu0 %v1018
    %v1086 = vpop.f32.mrf.mxu0
    %v1087 = vadd.f32 %v1015, %v1086
    %v1088 = vpop.f32.mrf.mxu0
    %1089 = vdwg.mxu0
    %v1090 = vtanh.pop %v1087
    %s1091 = scalar_lea.vmem %s6, 192
    %v1092 = vld [vmem:[%s1091] sm:$0xff]
    %v1093 = vld [vmem:[%s1091 + $0x8] sm:$0xff]
    %v1094 = vld [vmem:[%s1091 + $0x10] sm:$0xff]
    %v1095 = vld [vmem:[%s1091 + $0x18] sm:$0xff]
    %v1096 = vld [vmem:[%s1091 + $0x20] sm:$0xff]
    %v1097 = vld [vmem:[%s1091 + $0x28] sm:$0xff]
    %v1098 = vld [vmem:[%s1091 + $0x30] sm:$0xff]
    %v1099 = vld [vmem:[%s1091 + $0x38] sm:$0xff]
    %s1100 = scalar_lea.vmem %s7, 3
    %v1101 = vld [vmem:[%s1100] sm:$0x1]
    %v1103 = vlaneseq
    %v1104 = vshrl.u32 %v1103, 7
    %v1105 = vsub.s32 0, %v1104
    %v1106 = vrot.slane %v1101, %v1105
    %v1109 = vsel %vm136, %v1090, 0
    %1111 = vmatprep.subr.mxu0 0.0
    %1112 = vmatpush1.msra.mxu0 0.0
    %1113 = vmatprep.subr.mxu0 0.0
    %1114 = vmatpush1.msra.mxu0 0.0
    %1115 = vmatprep.subr.mxu0 0.0
    %1116 = vmatpush1.msra.mxu0 0.0
    %1117 = vmatprep.subr.mxu0 0.0
    %1118 = vmatpush1.msra.mxu0 0.0
    %1119 = vmatprep.subr.mxu0 0.0
    %1120 = vmatpush1.msra.mxu0 0.0
    %1121 = vmatprep.subr.mxu0 0.0
    %1122 = vmatpush1.msra.mxu0 0.0
    %1123 = vmatprep.subr.mxu0 0.0
    %1124 = vmatpush1.msra.mxu0 0.0
    %1125 = vmatprep.subr.mxu0 0.0
    %1126 = vmatpush1.msra.mxu0 0.0
    %1127 = vmatprep.subr.mxu0 0.0
    %1128 = vmatpush1.msra.mxu0 %v1099
    %1129 = vmatprep.subr.mxu0 0.0
    %1130 = vmatpush1.msra.mxu0 %v1098
    %1131 = vmatprep.subr.mxu0 0.0
    %1132 = vmatpush1.msra.mxu0 %v1097
    %1133 = vmatprep.subr.mxu0 0.0
    %1134 = vmatpush1.msra.mxu0 %v1096
    %1135 = vmatprep.subr.mxu0 0.0
    %1136 = vmatpush1.msra.mxu0 %v1095
    %1137 = vmatprep.subr.mxu0 0.0
    %1138 = vmatpush1.msra.mxu0 %v1094
    %1139 = vmatprep.subr.mxu0 0.0
    %1140 = vmatpush1.msra.mxu0 %v1093
    %1141 = vmatprep.subr.mxu0 0.0
    %1142 = vmatpush1.msra.mxu0 %v1092
    %1143 = vmatprep.subr.mxu0 0.0
    %1144 = vmatpush2.msra.mxu0 0.0
    %1145 = vmatprep.subr.mxu0 0.0
    %1146 = vmatpush2.msra.mxu0 0.0
    %1147 = vmatprep.subr.mxu0 0.0
    %1148 = vmatpush2.msra.mxu0 0.0
    %1149 = vmatprep.subr.mxu0 0.0
    %1150 = vmatpush2.msra.mxu0 0.0
    %1151 = vmatprep.subr.mxu0 0.0
    %1152 = vmatpush2.msra.mxu0 0.0
    %1153 = vmatprep.subr.mxu0 0.0
    %1154 = vmatpush2.msra.mxu0 0.0
    %1155 = vmatprep.subr.mxu0 0.0
    %1156 = vmatpush2.msra.mxu0 0.0
    %1157 = vmatprep.subr.mxu0 0.0
    %1158 = vmatpush2.msra.mxu0 0.0
    %1159 = vmatprep.subr.mxu0 0.0
    %1160 = vmatpush2.msra.mxu0 0.0
    %1161 = vmatprep.subr.mxu0 0.0
    %1162 = vmatpush2.msra.mxu0 0.0
    %1163 = vmatprep.subr.mxu0 0.0
    %1164 = vmatpush2.msra.mxu0 0.0
    %1165 = vmatprep.subr.mxu0 0.0
    %1166 = vmatpush2.msra.mxu0 0.0
    %1167 = vmatprep.subr.mxu0 0.0
    %1168 = vmatpush2.msra.mxu0 0.0
    %1169 = vmatprep.subr.mxu0 0.0
    %1170 = vmatpush2.msra.mxu0 0.0
    %1171 = vmatprep.subr.mxu0 0.0
    %1172 = vmatpush2.msra.mxu0 0.0
    %1173 = vmatprep.subr.mxu0 0.0
    %1174 = vmatpush2.msra.mxu0 0.0
    %1175 = vmatprep.mubr.f32.mxu0 0.0
    %1176 = vmatmul.mubr.f32.gmra.mxu0 %v1109
    %v1177 = vpop.f32.mrf.mxu0
    %v1178 = vadd.f32 %v1106, %v1177
    %v1179 = vpop.f32.mrf.mxu0
    %1180 = vdwg.mxu0
    %v1182 = vlaneseq
    %v1183 = vshrl.u32 %v1182, 7
    %v1184 = vsub.s32 0, %v1183
    %v1185 = vrot.slane %v913, %v1184
    %v1187 = vmul.f32 %v1185, %v909
    %v1188 = vmul.f32 %v1178, 1.442695
    %v1189 = vpow.pop %v1188
    %v1190 = vmul.f32 %v909, %v1189
    %1192 = vrot.lane.b32.xlu0 %v1178, 120
    %v1193 = vpop.permute.xlu0 %1192
    %v1195 = vadd.f32 %v1190, %v1193
    %v1197 = vlaneseq
    %v1198 = vshrl.u32 %v1197, 7
    %v1199 = vsub.s32 0, %v1198
    %v1200 = vrot.slane %v915, %v1199
    %v1202 = vmul.f32 %v1200, %v1195
    %v1203 = vadd.f32 %v1187, %v1202
    %v1204 = vmul.f32 %v1200, %v1178
    %v1205 = vadd.f32 %v911, %v1204
    %1206 = vst.msk [vmem:[#allocation2] sm:$0xff] %vm46, %v1203
    %v1207 = vsel %vm46, %v1205, 0.0
    %1208 = vadd.xlane.f32.xlu0 %v1207
    %v1209 = vpop.xlane.xlu0 %1208
    %vm1210 = vcmask 7168
    %1211 = vst.msk [vmem:[%s10] sm:$0xff] %vm1210, %v1209
    // Predicated region
    $region38: #{tpu_custom_call.1} parent=1 // pred_check
      _
    $region39: #{tpu_custom_call.1} parent=1 // pred_check_branch
      %1213 = sbr.rel (0) target = $region41
    $region40: #{tpu_custom_call.1} parent=1 // pred_region
      %s1215 = ssub.s32 128, 128
      %1216 = vsyncadd [#allocation3], %s1215
      %s1218 = sshll.u32 [#allocation2], 4
      %s1219 = int_to_ptr.vmem [resolvable:$true] %s1218
      %1221 = dma.vmem_to_hbm [thread:$0]  %s1219, 128, %s9, [#allocation3]
    $region41: #{tpu_custom_call.1} parent=1 // pred_fallthru
      _
    // Predicated region
    $region42: #{tpu_custom_call.1} parent=1 // pred_check
      _
    $region43: #{tpu_custom_call.1} parent=1 // pred_check_branch
      %1223 = sbr.rel (0) target = $region45
    $region44: #{tpu_custom_call.1} parent=1 // pred_region
      _
    $region45: #{tpu_custom_call.1} parent=1 // pred_fallthru
      _
    // Predicated region
    $region46: #{tpu_custom_call.1} parent=1 // pred_check
      _
    $region47: #{tpu_custom_call.1} parent=1 // pred_check_branch
      %1225 = sbr.rel (0) target = $region49
    $region48: #{tpu_custom_call.1} parent=1 // pred_region
      %1226 = dma.done [#allocation3], 128
    $region49: #{tpu_custom_call.1} parent=1 // pred_fallthru
      _
    // Predicated region
    $region50: #{tpu_custom_call.1} parent=1 // pred_check
      _
    $region51: #{tpu_custom_call.1} parent=1 // pred_check_branch
      %1228 = sbr.rel (0) target = $region53
    $region52: #{tpu_custom_call.1} parent=1 // pred_region
      _
    $region53: #{tpu_custom_call.1} parent=1 // pred_fallthru
      _
    %1229 = vsyncpa [#allocation3], 1

</llo_original>
